<compile_context>
chip_gen: v7x
topology: tpu7x:2x2x1
jax: 0.10.0
libtpu: 0.0.40
codegen_flags: <defaults>
</compile_context>

<pallas_src>
import functools

import jax
import jax.numpy as jnp
from jax.experimental import pallas as pl
from jax.experimental.pallas import tpu as pltpu

_LANE = 128


def _round_up(n, m):
    return ((n + m - 1) // m) * m


def _actor_critic_kernel(
    x_ref,                 # [TB, S] f32 (cast to bf16 in-kernel)
    w1_ref, b1_ref,        # fused first layer: [S, 512] bf16, [1, 512] f32
    aw2_ref, ab2_ref,      # actor layer 2:     [256, 256] bf16
    aw3_ref, ab3_ref,      # actor layer 3:     [256, PAD] bf16 (zero-padded past A)
    cw2_ref, cb2_ref,      # critic layer 2:    [256, 128] bf16
    cw3_ref, cb3_ref,      # critic layer 3:    [128, 64]  bf16
    cw4t_ref, cb4_ref,     # critic layer 4 as a row vector: [1, 64] f32, [1, 1] f32
    logits_ref,            # out: [TB, PAD] bf16 (cols >= action_dim are 0)
    value_ref,             # out: [TB, 1]   f32
):
    f32 = jnp.float32
    bf16 = jnp.bfloat16

    # In-kernel cast of x: a VPU op fully hidden under the first matmul.
    x = x_ref[...].astype(bf16)                                        # (TB, S)

    # ---- fused first layer (actor + critic share one MXU pass over x) ------
    h0 = jnp.dot(x, w1_ref[...], preferred_element_type=f32) + b1_ref[...]
    h0 = jnp.maximum(h0, 0.0)                                          # (TB, 512) f32
    ha = h0[:, :256].astype(bf16)                                      # actor hidden
    hc = h0[:, 256:].astype(bf16)                                      # critic hidden

    # ---- actor head ---------------------------------------------------------
    h = jnp.dot(ha, aw2_ref[...], preferred_element_type=f32) + ab2_ref[...]
    h = jnp.maximum(h, 0.0).astype(bf16)
    logits = jnp.dot(h, aw3_ref[...], preferred_element_type=f32) + ab3_ref[...]
    logits_ref[...] = logits.astype(logits_ref.dtype)                  # (TB, PAD)

    # ---- critic head --------------------------------------------------------
    c = jnp.dot(hc, cw2_ref[...], preferred_element_type=f32) + cb2_ref[...]
    c = jnp.maximum(c, 0.0).astype(bf16)
    c = jnp.dot(c, cw3_ref[...], preferred_element_type=f32) + cb3_ref[...]
    c = jnp.maximum(c, 0.0)                                            # (TB, 64) f32
    # Final (64 -> 1) layer on the VPU/XLU instead of an N=1 MXU matmul.
    v = jnp.sum(c * cw4t_ref[...], axis=-1, keepdims=True) + cb4_ref[...]
    value_ref[...] = v.astype(value_ref.dtype)                         # (TB, 1) f32


def init_params(key, state_dim, action_dim):
    """Deterministic parameter init; shapes match ActorCritic.__init__ (stored [in, out])."""
    def linear(k, fan_in, fan_out):
        kw, kb = jax.random.split(k)
        bound = 1.0 / jnp.sqrt(fan_in)
        w = jax.random.uniform(kw, (fan_in, fan_out), jnp.float32, -bound, bound)
        b = jax.random.uniform(kb, (1, fan_out), jnp.float32, -bound, bound)
        return w, b

    keys = jax.random.split(key, 7)
    p = {}
    # actor head: Linear(S,256) -> ReLU -> Linear(256,256) -> ReLU -> Linear(256,A)
    p["aw1"], p["ab1"] = linear(keys[0], state_dim, 256)
    p["aw2"], p["ab2"] = linear(keys[1], 256, 256)
    p["aw3"], p["ab3"] = linear(keys[2], 256, action_dim)
    # critic head: Linear(S,256) -> ReLU -> Linear(256,128) -> ReLU -> Linear(128,64) -> ReLU -> Linear(64,1)
    p["cw1"], p["cb1"] = linear(keys[3], state_dim, 256)
    p["cw2"], p["cb2"] = linear(keys[4], 256, 128)
    p["cw3"], p["cb3"] = linear(keys[5], 128, 64)
    p["cw4"], p["cb4"] = linear(keys[6], 64, 1)
    return p


def prepare_params(params, action_dim):
    """One-time repack: fuse first layers, lane-pad actor output, cast matmul weights to bf16."""
    pad = max(_LANE, _round_up(action_dim, _LANE))
    bf = lambda a: a.astype(jnp.bfloat16)

    aw3_pad = jnp.zeros((params["aw3"].shape[0], pad), jnp.float32)
    aw3_pad = aw3_pad.at[:, :action_dim].set(params["aw3"])
    ab3_pad = jnp.zeros((1, pad), jnp.float32).at[:, :action_dim].set(params["ab3"][0])

    return {
        "w1": bf(jnp.concatenate([params["aw1"], params["cw1"]], axis=1)),  # (S, 512)
        "b1": jnp.concatenate([params["ab1"], params["cb1"]], axis=1),      # (1, 512) f32
        "aw2": bf(params["aw2"]), "ab2": params["ab2"],
        "aw3": bf(aw3_pad),       "ab3": ab3_pad,
        "cw2": bf(params["cw2"]), "cb2": params["cb2"],
        "cw3": bf(params["cw3"]), "cb3": params["cb3"],
        "cw4t": params["cw4"].T,  # (1, 64) f32 — used on the VPU, keep full precision
        "cb4": params["cb4"],     # (1, 1)  f32
        "pad": pad,
        "action_dim": action_dim,
    }


def _pick_batch_tile(B):
    """Fat tiles amortize per-grid-step overhead; >=2 grid steps keeps both v7x TCs busy."""
    if B <= 16:
        return B
    # Prefer the largest even divisor <= 512 that still yields >= 2 grid steps.
    for tb in (512, 256, 128, 64, 32, 16):
        if tb < B and B % tb == 0:
            return tb
    return B  # no even split; run the whole batch as a single full-extent tile


def actor_critic_forward(x, prep, *, batch_tile=None):
    """Fused actor/critic forward. x: [B, state_dim] float32.

    Returns (logits, value): logits [B, action_dim] bf16, value [B, 1] f32.
    """
    B, S = x.shape
    A = prep["action_dim"]
    PAD = prep["pad"]

    TB = _pick_batch_tile(B) if batch_tile is None else batch_tile
    assert B % TB == 0, "batch must be divisible by batch_tile"
    # bf16 logits tile => 16-row sublane granularity unless the tile spans the full batch.
    assert TB == B or TB % 16 == 0, "batch_tile must be a multiple of 16 (or == B)"

    weight_names = ["w1", "b1", "aw2", "ab2", "aw3", "ab3",
                    "cw2", "cb2", "cw3", "cb3", "cw4t", "cb4"]
    weights = [prep[n] for n in weight_names]

    def full_spec(arr):
        # whole-array block, constant across the batch grid (stays resident in VMEM)
        return pl.BlockSpec(arr.shape, lambda i: (0,) * arr.ndim)

    weight_bytes = sum(int(w.size) * w.dtype.itemsize for w in weights)
    cost = pl.CostEstimate(
        flops=2 * B * (S * 512 + 256 * 256 + 256 * PAD + 256 * 128 + 128 * 64 + 64),
        transcendentals=0,
        bytes_accessed=B * (4 * S + 2 * PAD + 4) + weight_bytes,
    )

    logits_slab, value = pl.pallas_call(
        _actor_critic_kernel,
        out_shape=(
            jax.ShapeDtypeStruct((B, PAD), jnp.bfloat16),
            jax.ShapeDtypeStruct((B, 1), jnp.float32),
        ),
        grid=(B // TB,),
        in_specs=[pl.BlockSpec((TB, S), lambda i: (i, 0))]
                 + [full_spec(w) for w in weights],
        out_specs=(
            pl.BlockSpec((TB, PAD), lambda i: (i, 0)),
            pl.BlockSpec((TB, 1), lambda i: (i, 0)),
        ),
        compiler_params=pltpu.CompilerParams(
            dimension_semantics=("parallel",),
        ),
        cost_estimate=cost,
    )(x, *weights)

    # NOTE: if the consumer is another on-device op, prefer consuming the padded
    # slab directly (cols >= A are exactly 0) to avoid an extra HBM copy here.
    return logits_slab[:, :A], value


def reference_forward(x, p):
    """Pure-JAX f32 reference (mirrors the PyTorch forward exactly)."""
    h = jnp.maximum(x @ p["aw1"] + p["ab1"], 0.0)
    h = jnp.maximum(h @ p["aw2"] + p["ab2"], 0.0)
    logits = h @ p["aw3"] + p["ab3"]

    c = jnp.maximum(x @ p["cw1"] + p["cb1"], 0.0)
    c = jnp.maximum(c @ p["cw2"] + p["cb2"], 0.0)
    c = jnp.maximum(c @ p["cw3"] + p["cb3"], 0.0)
    value = c @ p["cw4"] + p["cb4"]
    return logits, value


if __name__ == "__main__":
    key = jax.random.PRNGKey(0)
    k_params, k_x = jax.random.split(key)

    batch = 32
    state_dim = 32
    action_dim = 16

    params = init_params(k_params, state_dim, action_dim)
    prep = prepare_params(params, action_dim)
    x = jax.random.normal(k_x, (batch, state_dim), jnp.float32)

    # Default tile selection -> TB=16, grid of 2: exercises batch pipelining and
    # gives both TensorCores work on v7x.
    logits, value = actor_critic_forward(x, prep)
    logits, value = jax.block_until_ready((logits, value))

    ref_logits, ref_value = reference_forward(x, params)
    assert logits.shape == (batch, action_dim)
    assert value.shape == (batch, 1)
    # bf16 weights/activations with f32 accumulation (and bf16 logits output):
    # compare to the f32 reference with a tolerance that covers bf16 rounding
    # but catches real bugs. Value stays f32 end-to-end except bf16 matmul inputs.
    assert jnp.allclose(logits.astype(jnp.float32), ref_logits, atol=3e-2, rtol=3e-2), (
        float(jnp.max(jnp.abs(logits.astype(jnp.float32) - ref_logits))))
    assert jnp.allclose(value, ref_value, atol=3e-2, rtol=3e-2), (
        float(jnp.max(jnp.abs(value - ref_value))))

    print("KERNEL_OK")
</pallas_src>

<mosaic_0001>
module attributes {stable_mosaic.version = 11 : i64} {
  func.func @_actor_critic_kernel(%arg0: i32, %arg1: memref<16x32xf32, #tpu.memory_space<vmem>>, %arg2: memref<32x512xbf16, #tpu.memory_space<vmem>>, %arg3: memref<1x512xf32, #tpu.memory_space<vmem>>, %arg4: memref<256x256xbf16, #tpu.memory_space<vmem>>, %arg5: memref<1x256xf32, #tpu.memory_space<vmem>>, %arg6: memref<256x128xbf16, #tpu.memory_space<vmem>>, %arg7: memref<1x128xf32, #tpu.memory_space<vmem>>, %arg8: memref<256x128xbf16, #tpu.memory_space<vmem>>, %arg9: memref<1x128xf32, #tpu.memory_space<vmem>>, %arg10: memref<128x64xbf16, #tpu.memory_space<vmem>>, %arg11: memref<1x64xf32, #tpu.memory_space<vmem>>, %arg12: memref<1x64xf32, #tpu.memory_space<vmem>>, %arg13: memref<1x1xf32, #tpu.memory_space<vmem>>, %arg14: memref<16x128xbf16, #tpu.memory_space<vmem>>, %arg15: memref<16x1xf32, #tpu.memory_space<vmem>>) attributes {dimension_semantics = [#tpu.dimension_semantics<parallel>], iteration_bounds = array<i64: 2>, scalar_prefetch = 0 : i64, scratch_operands = 0 : i64, tpu.core_type = #tpu.core_type<tc>, window_params = [{transform_indices = @transform_0, window_bounds = array<i64: 16, 32>}, {pipeline_mode = #tpu.pipeline_mode<synchronous>, transform_indices = @transform_1, window_bounds = array<i64: 32, 512>}, {pipeline_mode = #tpu.pipeline_mode<synchronous>, transform_indices = @transform_2, window_bounds = array<i64: 1, 512>}, {pipeline_mode = #tpu.pipeline_mode<synchronous>, transform_indices = @transform_3, window_bounds = array<i64: 256, 256>}, {pipeline_mode = #tpu.pipeline_mode<synchronous>, transform_indices = @transform_4, window_bounds = array<i64: 1, 256>}, {pipeline_mode = #tpu.pipeline_mode<synchronous>, transform_indices = @transform_5, window_bounds = array<i64: 256, 128>}, {pipeline_mode = #tpu.pipeline_mode<synchronous>, transform_indices = @transform_6, window_bounds = array<i64: 1, 128>}, {pipeline_mode = #tpu.pipeline_mode<synchronous>, transform_indices = @transform_7, window_bounds = array<i64: 256, 128>}, {pipeline_mode = #tpu.pipeline_mode<synchronous>, transform_indices = @transform_8, window_bounds = array<i64: 1, 128>}, {pipeline_mode = #tpu.pipeline_mode<synchronous>, transform_indices = @transform_9, window_bounds = array<i64: 128, 64>}, {pipeline_mode = #tpu.pipeline_mode<synchronous>, transform_indices = @transform_10, window_bounds = array<i64: 1, 64>}, {pipeline_mode = #tpu.pipeline_mode<synchronous>, transform_indices = @transform_11, window_bounds = array<i64: 1, 64>}, {pipeline_mode = #tpu.pipeline_mode<synchronous>, transform_indices = @transform_12, window_bounds = array<i64: 1, 1>}, {transform_indices = @transform_13, window_bounds = array<i64: 16, 128>}, {transform_indices = @transform_14, window_bounds = array<i64: 16, 1>}]} {
    %c0 = arith.constant 0 : index
    %c0_0 = arith.constant 0 : index
    %0 = vector.load %arg1[%c0, %c0_0] : memref<16x32xf32, #tpu.memory_space<vmem>>, vector<16x32xf32>
    %1 = arith.truncf %0 : vector<16x32xf32> to vector<16x32xbf16>
    %c0_1 = arith.constant 0 : index
    %c0_2 = arith.constant 0 : index
    %2 = vector.load %arg2[%c0_1, %c0_2] : memref<32x512xbf16, #tpu.memory_space<vmem>>, vector<32x512xbf16>
    %cst = arith.constant dense<0.000000e+00> : vector<16x512xf32>
    %3 = tpu.matmul %1, %2, %cst {dimension_numbers = #tpu.dot_dimension_numbers<[1], [0], [0], [1], [0, 0, 1, 1], [], []>} : vector<16x32xbf16>, vector<32x512xbf16>, vector<16x512xf32> -> vector<16x512xf32>
    %c0_3 = arith.constant 0 : index
    %c0_4 = arith.constant 0 : index
    %4 = vector.load %arg3[%c0_3, %c0_4] : memref<1x512xf32, #tpu.memory_space<vmem>>, vector<1x512xf32>
    %5 = vector.broadcast %4 : vector<1x512xf32> to vector<16x512xf32>
    %6 = arith.addf %3, %5 : vector<16x512xf32>
    %cst_5 = arith.constant 0.000000e+00 : f32
    %7 = vector.broadcast %cst_5 : f32 to vector<16x512xf32>
    %8 = arith.maximumf %6, %7 : vector<16x512xf32>
    %9 = vector.extract_strided_slice %8 {offsets = [0, 0], sizes = [16, 256], strides = [1, 1]} : vector<16x512xf32> to vector<16x256xf32>
    %10 = arith.truncf %9 : vector<16x256xf32> to vector<16x256xbf16>
    %11 = vector.extract_strided_slice %8 {offsets = [0, 256], sizes = [16, 256], strides = [1, 1]} : vector<16x512xf32> to vector<16x256xf32>
    %12 = arith.truncf %11 : vector<16x256xf32> to vector<16x256xbf16>
    %c0_6 = arith.constant 0 : index
    %c0_7 = arith.constant 0 : index
    %13 = vector.load %arg4[%c0_6, %c0_7] : memref<256x256xbf16, #tpu.memory_space<vmem>>, vector<256x256xbf16>
    %cst_8 = arith.constant dense<0.000000e+00> : vector<16x256xf32>
    %14 = tpu.matmul %10, %13, %cst_8 {dimension_numbers = #tpu.dot_dimension_numbers<[1], [0], [0], [1], [0, 0, 1, 1], [], []>} : vector<16x256xbf16>, vector<256x256xbf16>, vector<16x256xf32> -> vector<16x256xf32>
    %c0_9 = arith.constant 0 : index
    %c0_10 = arith.constant 0 : index
    %15 = vector.load %arg5[%c0_9, %c0_10] : memref<1x256xf32, #tpu.memory_space<vmem>>, vector<1x256xf32>
    %16 = vector.broadcast %15 : vector<1x256xf32> to vector<16x256xf32>
    %17 = arith.addf %14, %16 : vector<16x256xf32>
    %cst_11 = arith.constant 0.000000e+00 : f32
    %18 = vector.broadcast %cst_11 : f32 to vector<16x256xf32>
    %19 = arith.maximumf %17, %18 : vector<16x256xf32>
    %20 = arith.truncf %19 : vector<16x256xf32> to vector<16x256xbf16>
    %c0_12 = arith.constant 0 : index
    %c0_13 = arith.constant 0 : index
    %21 = vector.load %arg6[%c0_12, %c0_13] : memref<256x128xbf16, #tpu.memory_space<vmem>>, vector<256x128xbf16>
    %cst_14 = arith.constant dense<0.000000e+00> : vector<16x128xf32>
    %22 = tpu.matmul %20, %21, %cst_14 {dimension_numbers = #tpu.dot_dimension_numbers<[1], [0], [0], [1], [0, 0, 1, 1], [], []>} : vector<16x256xbf16>, vector<256x128xbf16>, vector<16x128xf32> -> vector<16x128xf32>
    %c0_15 = arith.constant 0 : index
    %c0_16 = arith.constant 0 : index
    %23 = vector.load %arg7[%c0_15, %c0_16] : memref<1x128xf32, #tpu.memory_space<vmem>>, vector<1x128xf32>
    %24 = vector.broadcast %23 : vector<1x128xf32> to vector<16x128xf32>
    %25 = arith.addf %22, %24 : vector<16x128xf32>
    %26 = arith.truncf %25 : vector<16x128xf32> to vector<16x128xbf16>
    %c0_17 = arith.constant 0 : index
    %c0_18 = arith.constant 0 : index
    %27 = vector.load %arg14[%c0_17, %c0_18] : memref<16x128xbf16, #tpu.memory_space<vmem>>, vector<16x128xbf16>
    tpu.vector_store %arg14[%c0_17, %c0_18], %26 {strides = array<i32>} : memref<16x128xbf16, #tpu.memory_space<vmem>>, vector<16x128xbf16>,
    %c0_19 = arith.constant 0 : index
    %c0_20 = arith.constant 0 : index
    %28 = vector.load %arg8[%c0_19, %c0_20] : memref<256x128xbf16, #tpu.memory_space<vmem>>, vector<256x128xbf16>
    %cst_21 = arith.constant dense<0.000000e+00> : vector<16x128xf32>
    %29 = tpu.matmul %12, %28, %cst_21 {dimension_numbers = #tpu.dot_dimension_numbers<[1], [0], [0], [1], [0, 0, 1, 1], [], []>} : vector<16x256xbf16>, vector<256x128xbf16>, vector<16x128xf32> -> vector<16x128xf32>
    %c0_22 = arith.constant 0 : index
    %c0_23 = arith.constant 0 : index
    %30 = vector.load %arg9[%c0_22, %c0_23] : memref<1x128xf32, #tpu.memory_space<vmem>>, vector<1x128xf32>
    %31 = vector.broadcast %30 : vector<1x128xf32> to vector<16x128xf32>
    %32 = arith.addf %29, %31 : vector<16x128xf32>
    %cst_24 = arith.constant 0.000000e+00 : f32
    %33 = vector.broadcast %cst_24 : f32 to vector<16x128xf32>
    %34 = arith.maximumf %32, %33 : vector<16x128xf32>
    %35 = arith.truncf %34 : vector<16x128xf32> to vector<16x128xbf16>
    %c0_25 = arith.constant 0 : index
    %c0_26 = arith.constant 0 : index
    %36 = vector.load %arg10[%c0_25, %c0_26] : memref<128x64xbf16, #tpu.memory_space<vmem>>, vector<128x64xbf16>
    %cst_27 = arith.constant dense<0.000000e+00> : vector<16x64xf32>
    %37 = tpu.matmul %35, %36, %cst_27 {dimension_numbers = #tpu.dot_dimension_numbers<[1], [0], [0], [1], [0, 0, 1, 1], [], []>} : vector<16x128xbf16>, vector<128x64xbf16>, vector<16x64xf32> -> vector<16x64xf32>
    %c0_28 = arith.constant 0 : index
    %c0_29 = arith.constant 0 : index
    %38 = vector.load %arg11[%c0_28, %c0_29] : memref<1x64xf32, #tpu.memory_space<vmem>>, vector<1x64xf32>
    %39 = vector.broadcast %38 : vector<1x64xf32> to vector<16x64xf32>
    %40 = arith.addf %37, %39 : vector<16x64xf32>
    %cst_30 = arith.constant 0.000000e+00 : f32
    %41 = vector.broadcast %cst_30 : f32 to vector<16x64xf32>
    %42 = arith.maximumf %40, %41 : vector<16x64xf32>
    %c0_31 = arith.constant 0 : index
    %c0_32 = arith.constant 0 : index
    %43 = vector.load %arg12[%c0_31, %c0_32] : memref<1x64xf32, #tpu.memory_space<vmem>>, vector<1x64xf32>
    %44 = vector.broadcast %43 : vector<1x64xf32> to vector<16x64xf32>
    %45 = arith.mulf %42, %44 : vector<16x64xf32>
    %cst_33 = arith.constant dense<0.000000e+00> : vector<16xf32>
    %46 = vector.multi_reduction <add>, %45, %cst_33 [1] : vector<16x64xf32> to vector<16xf32>
    %47 = vector.shape_cast %46 : vector<16xf32> to vector<16x1xf32>
    %c0_34 = arith.constant 0 : index
    %c0_35 = arith.constant 0 : index
    %48 = vector.load %arg13[%c0_34, %c0_35] : memref<1x1xf32, #tpu.memory_space<vmem>>, vector<1x1xf32>
    %49 = vector.broadcast %48 : vector<1x1xf32> to vector<16x1xf32>
    %50 = arith.addf %47, %49 : vector<16x1xf32>
    %c0_36 = arith.constant 0 : index
    %c0_37 = arith.constant 0 : index
    %51 = vector.load %arg15[%c0_36, %c0_37] : memref<16x1xf32, #tpu.memory_space<vmem>>, vector<16x1xf32>
    tpu.vector_store %arg15[%c0_36, %c0_37], %50 {strides = array<i32>} : memref<16x1xf32, #tpu.memory_space<vmem>>, vector<16x1xf32>,
    return
  }
  func.func @transform_0(%arg0: i32) -> (i32, i32) {
    %c0_i32 = arith.constant 0 : i32
    %c0_i32_0 = arith.constant 0 : i32
    return %arg0, %c0_i32 : i32, i32
  }
  func.func @transform_1(%arg0: i32) -> (i32, i32) {
    %c0_i32 = arith.constant 0 : i32
    %c0_i32_0 = arith.constant 0 : i32
    %c0_i32_1 = arith.constant 0 : i32
    return %c0_i32, %c0_i32_0 : i32, i32
  }
  func.func @transform_2(%arg0: i32) -> (i32, i32) {
    %c0_i32 = arith.constant 0 : i32
    %c0_i32_0 = arith.constant 0 : i32
    %c0_i32_1 = arith.constant 0 : i32
    return %c0_i32, %c0_i32_0 : i32, i32
  }
  func.func @transform_3(%arg0: i32) -> (i32, i32) {
    %c0_i32 = arith.constant 0 : i32
    %c0_i32_0 = arith.constant 0 : i32
    %c0_i32_1 = arith.constant 0 : i32
    return %c0_i32, %c0_i32_0 : i32, i32
  }
  func.func @transform_4(%arg0: i32) -> (i32, i32) {
    %c0_i32 = arith.constant 0 : i32
    %c0_i32_0 = arith.constant 0 : i32
    %c0_i32_1 = arith.constant 0 : i32
    return %c0_i32, %c0_i32_0 : i32, i32
  }
  func.func @transform_5(%arg0: i32) -> (i32, i32) {
    %c0_i32 = arith.constant 0 : i32
    %c0_i32_0 = arith.constant 0 : i32
    %c0_i32_1 = arith.constant 0 : i32
    return %c0_i32, %c0_i32_0 : i32, i32
  }
  func.func @transform_6(%arg0: i32) -> (i32, i32) {
    %c0_i32 = arith.constant 0 : i32
    %c0_i32_0 = arith.constant 0 : i32
    %c0_i32_1 = arith.constant 0 : i32
    return %c0_i32, %c0_i32_0 : i32, i32
  }
  func.func @transform_7(%arg0: i32) -> (i32, i32) {
    %c0_i32 = arith.constant 0 : i32
    %c0_i32_0 = arith.constant 0 : i32
    %c0_i32_1 = arith.constant 0 : i32
    return %c0_i32, %c0_i32_0 : i32, i32
  }
  func.func @transform_8(%arg0: i32) -> (i32, i32) {
    %c0_i32 = arith.constant 0 : i32
    %c0_i32_0 = arith.constant 0 : i32
    %c0_i32_1 = arith.constant 0 : i32
    return %c0_i32, %c0_i32_0 : i32, i32
  }
  func.func @transform_9(%arg0: i32) -> (i32, i32) {
    %c0_i32 = arith.constant 0 : i32
    %c0_i32_0 = arith.constant 0 : i32
    %c0_i32_1 = arith.constant 0 : i32
    return %c0_i32, %c0_i32_0 : i32, i32
  }
  func.func @transform_10(%arg0: i32) -> (i32, i32) {
    %c0_i32 = arith.constant 0 : i32
    %c0_i32_0 = arith.constant 0 : i32
    %c0_i32_1 = arith.constant 0 : i32
    return %c0_i32, %c0_i32_0 : i32, i32
  }
  func.func @transform_11(%arg0: i32) -> (i32, i32) {
    %c0_i32 = arith.constant 0 : i32
    %c0_i32_0 = arith.constant 0 : i32
    %c0_i32_1 = arith.constant 0 : i32
    return %c0_i32, %c0_i32_0 : i32, i32
  }
  func.func @transform_12(%arg0: i32) -> (i32, i32) {
    %c0_i32 = arith.constant 0 : i32
    %c0_i32_0 = arith.constant 0 : i32
    %c0_i32_1 = arith.constant 0 : i32
    return %c0_i32, %c0_i32_0 : i32, i32
  }
  func.func @transform_13(%arg0: i32) -> (i32, i32) {
    %c0_i32 = arith.constant 0 : i32
    %c0_i32_0 = arith.constant 0 : i32
    return %arg0, %c0_i32 : i32, i32
  }
  func.func @transform_14(%arg0: i32) -> (i32, i32) {
    %c0_i32 = arith.constant 0 : i32
    %c0_i32_0 = arith.constant 0 : i32
    return %arg0, %c0_i32 : i32, i32
  }
}

</mosaic_0001>

<llo_original>
// kernel: tpu_custom_call.1
$region0: #{tpu_custom_call.1}
  #allocation0 [shape = 'u32[]', space=smem, size = 0x4, offset = 0x4, fixed_abs, tag = 'smem constant byte address 0x4 - core index']
  #allocation1 [shape = 'u32[144,128]{1,0:T(1,128)}', space=vmem, size = 0x12000, scoped, tag = 'internal scratch']
  #allocation2 [shape = 'f32[1,1]{1,0:T(1,128)S(1)}', space=vmem, size = 0x200, scoped, tag = 'scoped memory for tpu_custom_call.1']
  %s0 = inlined_call_operand.vmem [shape: f32[32,32], index: 0, kind: input, shape index: {}]
  %s1 = inlined_call_operand.vmem [shape: bf16[32,512], index: 1, kind: input, shape index: {}]
  %s2 = inlined_call_operand.vmem [shape: f32[1,512], index: 2, kind: input, shape index: {}]
  %s3 = inlined_call_operand.hbm [shape: bf16[256,256], index: 3, kind: input, shape index: {}]
  %s4 = inlined_call_operand.hbm [shape: f32[1,256], index: 4, kind: input, shape index: {}]
  %s5 = inlined_call_operand.hbm [shape: bf16[256,128], index: 5, kind: input, shape index: {}]
  %s6 = inlined_call_operand.vmem [shape: f32[1,128], index: 6, kind: input, shape index: {}]
  %s7 = inlined_call_operand.hbm [shape: bf16[256,128], index: 7, kind: input, shape index: {}]
  %s8 = inlined_call_operand.hbm [shape: f32[1,128], index: 8, kind: input, shape index: {}]
  %s9 = inlined_call_operand.vmem [shape: bf16[128,64], index: 9, kind: input, shape index: {}]
  %s10 = inlined_call_operand.vmem [shape: f32[1,64], index: 10, kind: input, shape index: {}]
  %s11 = inlined_call_operand.vmem [shape: f32[1,64], index: 11, kind: input, shape index: {}]
  %s12 = inlined_call_operand.<no memory space> [shape: f32[1,1], index: 12, kind: input, shape index: {}]
  %s13 = inlined_call_operand.hbm [shape: bf16[32,128], index: 13, kind: output, shape index: {0}]
  %s14 = inlined_call_operand.vmem [shape: f32[32,1], index: 14, kind: output, shape index: {1}]
  %15 = xla_tuple %s13, %s14
  %s16 = sld [smem:[#allocation0]]
  $region113: #{tpu_custom_call.1} parent=0
    _
  %s18 = ssub.s32 1, %s16
  %s19 = scalar_select 0, %s18, %s16
  %v20 = vstv %s12
  %21 = vst [vmem:[#allocation2] sm:$0x1] %v20
  $region1: #{tpu_custom_call.1} parent=0
    #allocation3 [shape = 'u8[131072]{0}', space=vmem, size = 0x20000, scoped, tag = 'input window, operand 3, single buffered']
    #allocation4 [shape = 's32[2]{0}', space=sflag, size = 0x8, scoped, tag = 'scoped memory for tpu_custom_call.1']
    #allocation5 [shape = 's32[2]{0}', space=sflag, size = 0x8, scoped, tag = 'scoped memory for tpu_custom_call.1']
    #allocation6 [shape = 'u8[1024]{0}', space=vmem, size = 0x400, scoped, tag = 'input window, operand 4, single buffered']
    #allocation7 [shape = 's32[1]{0}', space=sflag, size = 0x4, scoped, tag = 'scoped memory for tpu_custom_call.1']
    #allocation8 [shape = 'u8[65536]{0}', space=vmem, size = 0x10000, scoped, tag = 'input window, operand 5, single buffered']
    #allocation9 [shape = 'u8[65536]{0}', space=vmem, size = 0x10000, scoped, tag = 'input window, operand 7, single buffered']
    #allocation10 [shape = 's32[1]{0}', space=sflag, size = 0x4, scoped, tag = 'scoped memory for tpu_custom_call.1']
    #allocation11 [shape = 'u8[512]{0}', space=vmem, size = 0x400, scoped, tag = 'input window, operand 8, single buffered']
    #allocation12 [shape = 'u8[8192]{0}', space=vmem, size = 0x2000, scoped, tag = 'output window, operand 0']
    %22 = vsyncpa [#allocation4], 0
    %23 = vsyncpa [#allocation7], 0
    %24 = vsyncpa [#allocation10], 0
    %25 = vsyncpa [#allocation5], 0
    %s26 = scalar_lea.sflag [#allocation5], 1
    %27 = vsyncpa %s26, 0
    loop: start=0, step=1, limit=4
    $region2: #{tpu_custom_call.1} parent=1 // loop_pre_header
      _
    $region3: #{tpu_custom_call.1} parent=1 // loop_header
      %s29 = sphi 0, %s33
      %p30 = scmp.ge.s32.totalorder %s29, 4
      %s39 = sphi 0, %s41
      %s42 = sphi 0, %s39
      %s43 = sphi 0, %s42
      %s59 = sphi 0, %s43
      %s63 = sphi 0, %s63
      %s65 = sphi 0, %s63
      %s66 = sphi 0, %s65
      %s80 = sphi 0, %s66
      %s84 = sphi 0, %s84
      %s86 = sphi 0, %s84
      %s87 = sphi 0, %s86
      %s101 = sphi 0, %s87
      %s105 = sphi 0, %s105
      %s107 = sphi 0, %s105
      %s108 = sphi 0, %s107
      %s122 = sphi 0, %s108
      %s126 = sphi 0, %s126
      %s128 = sphi 0, %s126
      %s129 = sphi 0, %s128
      %s143 = sphi 0, %s129
      %s147 = sphi 0, %s147
      %s149 = sphi 0, %s147
      %s150 = sphi 0, %s149
      %s164 = sphi 0, %s150
      %s168 = sphi 0, %s168
      %s170 = sphi 0, %s168
      %s171 = sphi 0, %s170
      %s185 = sphi 0, %s171
      %s189 = sphi 0, %s189
      %s191 = sphi 0, %s189
      %s192 = sphi 0, %s191
      %s206 = sphi 0, %s192
      %s210 = sphi 0, %s210
      %s212 = sphi 0, %s210
      %s213 = sphi 0, %s212
      %s227 = sphi 0, %s213
      %s231 = sphi 0, %s231
      %s233 = sphi 0, %s231
      %s234 = sphi 0, %s233
      %s248 = sphi 0, %s234
      %s252 = sphi 0, %s252
      %s254 = sphi 0, %s252
      %s255 = sphi 0, %s254
      %s269 = sphi 0, %s255
      %s273 = sphi 0, %s273
      %s275 = sphi 0, %s273
      %s276 = sphi 0, %s275
      %s290 = sphi 0, %s276
      %s294 = sphi 0, %s294
      %s296 = sphi 0, %s294
      %s297 = sphi 0, %s296
      %s311 = sphi 0, %s297
      %s317 = sphi 0, %s319
      %s320 = sphi 0, %s317
      %s321 = sphi 0, %s320
      %s337 = sphi 0, %s321
      %s343 = sphi 0, %s345
      %s346 = sphi 0, %s343
      %s347 = sphi 0, %s346
      %s363 = sphi 0, %s347
    $region4: #{tpu_custom_call.1} parent=1 // loop_header_branch
      %32 = sbr.rel (%p30) target = $region8
    $region5: #{tpu_custom_call.1} parent=1 // loop_body
      %s34 = ssub.s32 %s29, 1
      %s35 = ssub.s32 %s29, 2
      %s36 = sadd.s32 %s29, 1
      %s37 = ssub.s32 %s29, %s36
      %p38 = scmp.eq.s32.totalorder %s37, 0
      %s40 = sadd.s32 %s39, 1
      %s41 = scalar_select %p38, %s39, %s40
      %p44 = pneg %p38
      %p45 = scmp.eq.s32.totalorder %s29, 1
      %p46 = por %p44, %p45
      %p47 = scmp.ne.s32.totalorder %s39, %s42
      %p48 = scmp.eq.s32.totalorder %s29, 0
      %p49 = por %p47, %p48
      %p50 = scmp.ne.s32.totalorder %s39, %s42
      %p51 = scmp.eq.s32.totalorder %s34, 1
      %p52 = por %p50, %p51
      %p53 = scmp.ne.s32.totalorder %s42, %s43
      %p54 = scmp.eq.s32.totalorder %s34, 0
      %p55 = por %p53, %p54
      %p56 = scmp.ne.s32.totalorder %s42, %s43
      %p57 = scmp.eq.s32.totalorder %s35, 1
      %p58 = por %p56, %p57
      %p60 = scmp.ne.s32.totalorder %s43, %s59
      %p61 = scmp.eq.s32.totalorder %s35, 0
      %p62 = por %p60, %p61
      %s64 = sadd.s32 %s63, 1
      %p67 = scmp.eq.s32.totalorder %s29, 1
      %p68 = scmp.ne.s32.totalorder %s63, %s65
      %p69 = scmp.eq.s32.totalorder %s29, 0
      %p70 = por %p68, %p69
      %p71 = scmp.ne.s32.totalorder %s63, %s65
      %p72 = scmp.eq.s32.totalorder %s34, 1
      %p73 = por %p71, %p72
      %p74 = scmp.ne.s32.totalorder %s65, %s66
      %p75 = scmp.eq.s32.totalorder %s34, 0
      %p76 = por %p74, %p75
      %p77 = scmp.ne.s32.totalorder %s65, %s66
      %p78 = scmp.eq.s32.totalorder %s35, 1
      %p79 = por %p77, %p78
      %p81 = scmp.ne.s32.totalorder %s66, %s80
      %p82 = scmp.eq.s32.totalorder %s35, 0
      %p83 = por %p81, %p82
      %s85 = sadd.s32 %s84, 1
      %p88 = scmp.eq.s32.totalorder %s29, 1
      %p89 = scmp.ne.s32.totalorder %s84, %s86
      %p90 = scmp.eq.s32.totalorder %s29, 0
      %p91 = por %p89, %p90
      %p92 = scmp.ne.s32.totalorder %s84, %s86
      %p93 = scmp.eq.s32.totalorder %s34, 1
      %p94 = por %p92, %p93
      %p95 = scmp.ne.s32.totalorder %s86, %s87
      %p96 = scmp.eq.s32.totalorder %s34, 0
      %p97 = por %p95, %p96
      %p98 = scmp.ne.s32.totalorder %s86, %s87
      %p99 = scmp.eq.s32.totalorder %s35, 1
      %p100 = por %p98, %p99
      %p102 = scmp.ne.s32.totalorder %s87, %s101
      %p103 = scmp.eq.s32.totalorder %s35, 0
      %p104 = por %p102, %p103
      %s106 = sadd.s32 %s105, 1
      %p109 = scmp.eq.s32.totalorder %s29, 1
      %p110 = scmp.ne.s32.totalorder %s105, %s107
      %p111 = scmp.eq.s32.totalorder %s29, 0
      %p112 = por %p110, %p111
      %p113 = scmp.ne.s32.totalorder %s105, %s107
      %p114 = scmp.eq.s32.totalorder %s34, 1
      %p115 = por %p113, %p114
      %p116 = scmp.ne.s32.totalorder %s107, %s108
      %p117 = scmp.eq.s32.totalorder %s34, 0
      %p118 = por %p116, %p117
      %p119 = scmp.ne.s32.totalorder %s107, %s108
      %p120 = scmp.eq.s32.totalorder %s35, 1
      %p121 = por %p119, %p120
      %p123 = scmp.ne.s32.totalorder %s108, %s122
      %p124 = scmp.eq.s32.totalorder %s35, 0
      %p125 = por %p123, %p124
      %s127 = sadd.s32 %s126, 1
      %p130 = scmp.eq.s32.totalorder %s29, 1
      %p131 = scmp.ne.s32.totalorder %s126, %s128
      %p132 = scmp.eq.s32.totalorder %s29, 0
      %p133 = por %p131, %p132
      %p134 = scmp.ne.s32.totalorder %s126, %s128
      %p135 = scmp.eq.s32.totalorder %s34, 1
      %p136 = por %p134, %p135
      %p137 = scmp.ne.s32.totalorder %s128, %s129
      %p138 = scmp.eq.s32.totalorder %s34, 0
      %p139 = por %p137, %p138
      %p140 = scmp.ne.s32.totalorder %s128, %s129
      %p141 = scmp.eq.s32.totalorder %s35, 1
      %p142 = por %p140, %p141
      %p144 = scmp.ne.s32.totalorder %s129, %s143
      %p145 = scmp.eq.s32.totalorder %s35, 0
      %p146 = por %p144, %p145
      %s148 = sadd.s32 %s147, 1
      %p151 = scmp.eq.s32.totalorder %s29, 1
      %p152 = scmp.ne.s32.totalorder %s147, %s149
      %p153 = scmp.eq.s32.totalorder %s29, 0
      %p154 = por %p152, %p153
      %p155 = scmp.ne.s32.totalorder %s147, %s149
      %p156 = scmp.eq.s32.totalorder %s34, 1
      %p157 = por %p155, %p156
      %p158 = scmp.ne.s32.totalorder %s149, %s150
      %p159 = scmp.eq.s32.totalorder %s34, 0
      %p160 = por %p158, %p159
      %p161 = scmp.ne.s32.totalorder %s149, %s150
      %p162 = scmp.eq.s32.totalorder %s35, 1
      %p163 = por %p161, %p162
      %p165 = scmp.ne.s32.totalorder %s150, %s164
      %p166 = scmp.eq.s32.totalorder %s35, 0
      %p167 = por %p165, %p166
      %s169 = sadd.s32 %s168, 1
      %p172 = scmp.eq.s32.totalorder %s29, 1
      %p173 = scmp.ne.s32.totalorder %s168, %s170
      %p174 = scmp.eq.s32.totalorder %s29, 0
      %p175 = por %p173, %p174
      %p176 = scmp.ne.s32.totalorder %s168, %s170
      %p177 = scmp.eq.s32.totalorder %s34, 1
      %p178 = por %p176, %p177
      %p179 = scmp.ne.s32.totalorder %s170, %s171
      %p180 = scmp.eq.s32.totalorder %s34, 0
      %p181 = por %p179, %p180
      %p182 = scmp.ne.s32.totalorder %s170, %s171
      %p183 = scmp.eq.s32.totalorder %s35, 1
      %p184 = por %p182, %p183
      %p186 = scmp.ne.s32.totalorder %s171, %s185
      %p187 = scmp.eq.s32.totalorder %s35, 0
      %p188 = por %p186, %p187
      %s190 = sadd.s32 %s189, 1
      %p193 = scmp.eq.s32.totalorder %s29, 1
      %p194 = scmp.ne.s32.totalorder %s189, %s191
      %p195 = scmp.eq.s32.totalorder %s29, 0
      %p196 = por %p194, %p195
      %p197 = scmp.ne.s32.totalorder %s189, %s191
      %p198 = scmp.eq.s32.totalorder %s34, 1
      %p199 = por %p197, %p198
      %p200 = scmp.ne.s32.totalorder %s191, %s192
      %p201 = scmp.eq.s32.totalorder %s34, 0
      %p202 = por %p200, %p201
      %p203 = scmp.ne.s32.totalorder %s191, %s192
      %p204 = scmp.eq.s32.totalorder %s35, 1
      %p205 = por %p203, %p204
      %p207 = scmp.ne.s32.totalorder %s192, %s206
      %p208 = scmp.eq.s32.totalorder %s35, 0
      %p209 = por %p207, %p208
      %s211 = sadd.s32 %s210, 1
      %p214 = scmp.eq.s32.totalorder %s29, 1
      %p215 = scmp.ne.s32.totalorder %s210, %s212
      %p216 = scmp.eq.s32.totalorder %s29, 0
      %p217 = por %p215, %p216
      %p218 = scmp.ne.s32.totalorder %s210, %s212
      %p219 = scmp.eq.s32.totalorder %s34, 1
      %p220 = por %p218, %p219
      %p221 = scmp.ne.s32.totalorder %s212, %s213
      %p222 = scmp.eq.s32.totalorder %s34, 0
      %p223 = por %p221, %p222
      %p224 = scmp.ne.s32.totalorder %s212, %s213
      %p225 = scmp.eq.s32.totalorder %s35, 1
      %p226 = por %p224, %p225
      %p228 = scmp.ne.s32.totalorder %s213, %s227
      %p229 = scmp.eq.s32.totalorder %s35, 0
      %p230 = por %p228, %p229
      %s232 = sadd.s32 %s231, 1
      %p235 = scmp.eq.s32.totalorder %s29, 1
      %p236 = scmp.ne.s32.totalorder %s231, %s233
      %p237 = scmp.eq.s32.totalorder %s29, 0
      %p238 = por %p236, %p237
      %p239 = scmp.ne.s32.totalorder %s231, %s233
      %p240 = scmp.eq.s32.totalorder %s34, 1
      %p241 = por %p239, %p240
      %p242 = scmp.ne.s32.totalorder %s233, %s234
      %p243 = scmp.eq.s32.totalorder %s34, 0
      %p244 = por %p242, %p243
      %p245 = scmp.ne.s32.totalorder %s233, %s234
      %p246 = scmp.eq.s32.totalorder %s35, 1
      %p247 = por %p245, %p246
      %p249 = scmp.ne.s32.totalorder %s234, %s248
      %p250 = scmp.eq.s32.totalorder %s35, 0
      %p251 = por %p249, %p250
      %s253 = sadd.s32 %s252, 1
      %p256 = scmp.eq.s32.totalorder %s29, 1
      %p257 = scmp.ne.s32.totalorder %s252, %s254
      %p258 = scmp.eq.s32.totalorder %s29, 0
      %p259 = por %p257, %p258
      %p260 = scmp.ne.s32.totalorder %s252, %s254
      %p261 = scmp.eq.s32.totalorder %s34, 1
      %p262 = por %p260, %p261
      %p263 = scmp.ne.s32.totalorder %s254, %s255
      %p264 = scmp.eq.s32.totalorder %s34, 0
      %p265 = por %p263, %p264
      %p266 = scmp.ne.s32.totalorder %s254, %s255
      %p267 = scmp.eq.s32.totalorder %s35, 1
      %p268 = por %p266, %p267
      %p270 = scmp.ne.s32.totalorder %s255, %s269
      %p271 = scmp.eq.s32.totalorder %s35, 0
      %p272 = por %p270, %p271
      %s274 = sadd.s32 %s273, 1
      %p277 = scmp.eq.s32.totalorder %s29, 1
      %p278 = scmp.ne.s32.totalorder %s273, %s275
      %p279 = scmp.eq.s32.totalorder %s29, 0
      %p280 = por %p278, %p279
      %p281 = scmp.ne.s32.totalorder %s273, %s275
      %p282 = scmp.eq.s32.totalorder %s34, 1
      %p283 = por %p281, %p282
      %p284 = scmp.ne.s32.totalorder %s275, %s276
      %p285 = scmp.eq.s32.totalorder %s34, 0
      %p286 = por %p284, %p285
      %p287 = scmp.ne.s32.totalorder %s275, %s276
      %p288 = scmp.eq.s32.totalorder %s35, 1
      %p289 = por %p287, %p288
      %p291 = scmp.ne.s32.totalorder %s276, %s290
      %p292 = scmp.eq.s32.totalorder %s35, 0
      %p293 = por %p291, %p292
      %s295 = sadd.s32 %s294, 1
      %p298 = scmp.eq.s32.totalorder %s29, 1
      %p299 = scmp.ne.s32.totalorder %s294, %s296
      %p300 = scmp.eq.s32.totalorder %s29, 0
      %p301 = por %p299, %p300
      %p302 = scmp.ne.s32.totalorder %s294, %s296
      %p303 = scmp.eq.s32.totalorder %s34, 1
      %p304 = por %p302, %p303
      %p305 = scmp.ne.s32.totalorder %s296, %s297
      %p306 = scmp.eq.s32.totalorder %s34, 0
      %p307 = por %p305, %p306
      %p308 = scmp.ne.s32.totalorder %s296, %s297
      %p309 = scmp.eq.s32.totalorder %s35, 1
      %p310 = por %p308, %p309
      %p312 = scmp.ne.s32.totalorder %s297, %s311
      %p313 = scmp.eq.s32.totalorder %s35, 0
      %p314 = por %p312, %p313
      %s315 = ssub.s32 %s29, %s36
      %p316 = scmp.eq.s32.totalorder %s315, 0
      %s318 = sadd.s32 %s317, 1
      %s319 = scalar_select %p316, %s317, %s318
      %p322 = pneg %p316
      %p323 = scmp.eq.s32.totalorder %s29, 1
      %p324 = por %p322, %p323
      %p325 = scmp.ne.s32.totalorder %s317, %s320
      %p326 = scmp.eq.s32.totalorder %s29, 0
      %p327 = por %p325, %p326
      %p328 = scmp.ne.s32.totalorder %s317, %s320
      %p329 = scmp.eq.s32.totalorder %s34, 1
      %p330 = por %p328, %p329
      %p331 = scmp.ne.s32.totalorder %s320, %s321
      %p332 = scmp.eq.s32.totalorder %s34, 0
      %p333 = por %p331, %p332
      %p334 = scmp.ne.s32.totalorder %s320, %s321
      %p335 = scmp.eq.s32.totalorder %s35, 1
      %p336 = por %p334, %p335
      %p338 = scmp.ne.s32.totalorder %s321, %s337
      %p339 = scmp.eq.s32.totalorder %s35, 0
      %p340 = por %p338, %p339
      %s341 = ssub.s32 %s29, %s36
      %p342 = scmp.eq.s32.totalorder %s341, 0
      %s344 = sadd.s32 %s343, 1
      %s345 = scalar_select %p342, %s343, %s344
      %p348 = pneg %p342
      %p349 = scmp.eq.s32.totalorder %s29, 1
      %p350 = por %p348, %p349
      %p351 = scmp.ne.s32.totalorder %s343, %s346
      %p352 = scmp.eq.s32.totalorder %s29, 0
      %p353 = por %p351, %p352
      %p354 = scmp.ne.s32.totalorder %s343, %s346
      %p355 = scmp.eq.s32.totalorder %s34, 1
      %p356 = por %p354, %p355
      %p357 = scmp.ne.s32.totalorder %s346, %s347
      %p358 = scmp.eq.s32.totalorder %s34, 0
      %p359 = por %p357, %p358
      %p360 = scmp.ne.s32.totalorder %s346, %s347
      %p361 = scmp.eq.s32.totalorder %s35, 1
      %p362 = por %p360, %p361
      %p364 = scmp.ne.s32.totalorder %s347, %s363
      %p365 = scmp.eq.s32.totalorder %s35, 0
      %p366 = por %p364, %p365
      %p367 = scmp.le.s32.totalorder 1, %s29
      %p368 = scmp.lt.s32.totalorder %s29, 3
      %p369 = pnand %p367, %p368
      %p370 = pneg %p369
      // Predicated region
      $region9: #{tpu_custom_call.1} parent=5 // pred_check
        _
      $region10: #{tpu_custom_call.1} parent=5 // pred_check_branch
        %372 = sbr.rel (%p369) target = $region12
      $region11: #{tpu_custom_call.1} parent=5 // pred_region
        %s373 = ssub.s32 %s29, 1
        // Predicated region
        $region13: #{tpu_custom_call.1} parent=11 // pred_check
          %p374 = pneg %p76
        $region14: #{tpu_custom_call.1} parent=11 // pred_check_branch
          %376 = sbr.rel (%p374) target = $region16
        $region15: #{tpu_custom_call.1} parent=11 // pred_region
          _
        $region16: #{tpu_custom_call.1} parent=11 // pred_fallthru
          _
        // Predicated region
        $region17: #{tpu_custom_call.1} parent=11 // pred_check
          %p377 = pneg %p97
        $region18: #{tpu_custom_call.1} parent=11 // pred_check_branch
          %379 = sbr.rel (%p377) target = $region20
        $region19: #{tpu_custom_call.1} parent=11 // pred_region
          _
        $region20: #{tpu_custom_call.1} parent=11 // pred_fallthru
          _
        // Predicated region
        $region21: #{tpu_custom_call.1} parent=11 // pred_check
          %p380 = pneg %p118
        $region22: #{tpu_custom_call.1} parent=11 // pred_check_branch
          %382 = sbr.rel (%p380) target = $region24
        $region23: #{tpu_custom_call.1} parent=11 // pred_region
          %s384 = ssub.s32 4096, 4096
          %385 = vsyncadd [#allocation4], %s384
          %s386 = sshll.u32 [#allocation3], 4
          %s387 = int_to_ptr.vmem [resolvable:$true] %s386
          %392 = dma.hbm_to_vmem [thread:$0]  %s3, 4096, %s387, [#allocation4], 128, 128, 8
        $region24: #{tpu_custom_call.1} parent=11 // pred_fallthru
          _
        // Predicated region
        $region25: #{tpu_custom_call.1} parent=11 // pred_check
          %p393 = pneg %p139
        $region26: #{tpu_custom_call.1} parent=11 // pred_check_branch
          %395 = sbr.rel (%p393) target = $region28
        $region27: #{tpu_custom_call.1} parent=11 // pred_region
          %s397 = ssub.s32 32, 32
          %398 = vsyncadd [#allocation7], %s397
          %s400 = sshll.u32 [#allocation6], 4
          %s401 = int_to_ptr.vmem [resolvable:$true] %s400
          %403 = dma.hbm_to_vmem [thread:$0]  %s4, 32, %s401, [#allocation7]
        $region28: #{tpu_custom_call.1} parent=11 // pred_fallthru
          _
        // Predicated region
        $region29: #{tpu_custom_call.1} parent=11 // pred_check
          %p404 = pneg %p160
        $region30: #{tpu_custom_call.1} parent=11 // pred_check_branch
          %406 = sbr.rel (%p404) target = $region32
        $region31: #{tpu_custom_call.1} parent=11 // pred_region
          %s408 = ssub.s32 2048, 2048
          %409 = vsyncadd [#allocation7], %s408
          %s410 = sshll.u32 [#allocation8], 4
          %s411 = int_to_ptr.vmem [resolvable:$true] %s410
          %416 = dma.hbm_to_vmem [thread:$0]  %s5, 2048, %s411, [#allocation7], 64, 64, 4
        $region32: #{tpu_custom_call.1} parent=11 // pred_fallthru
          _
        // Predicated region
        $region33: #{tpu_custom_call.1} parent=11 // pred_check
          %p417 = pneg %p181
        $region34: #{tpu_custom_call.1} parent=11 // pred_check_branch
          %419 = sbr.rel (%p417) target = $region36
        $region35: #{tpu_custom_call.1} parent=11 // pred_region
          _
        $region36: #{tpu_custom_call.1} parent=11 // pred_fallthru
          _
        // Predicated region
        $region37: #{tpu_custom_call.1} parent=11 // pred_check
          %p420 = pneg %p202
        $region38: #{tpu_custom_call.1} parent=11 // pred_check_branch
          %422 = sbr.rel (%p420) target = $region40
        $region39: #{tpu_custom_call.1} parent=11 // pred_region
          %s424 = ssub.s32 2048, 2048
          %425 = vsyncadd [#allocation10], %s424
          %s426 = sshll.u32 [#allocation9], 4
          %s427 = int_to_ptr.vmem [resolvable:$true] %s426
          %432 = dma.hbm_to_vmem [thread:$0]  %s7, 2048, %s427, [#allocation10], 64, 64, 4
        $region40: #{tpu_custom_call.1} parent=11 // pred_fallthru
          _
        // Predicated region
        $region41: #{tpu_custom_call.1} parent=11 // pred_check
          %p433 = pneg %p223
        $region42: #{tpu_custom_call.1} parent=11 // pred_check_branch
          %435 = sbr.rel (%p433) target = $region44
        $region43: #{tpu_custom_call.1} parent=11 // pred_region
          %s437 = ssub.s32 16, 16
          %438 = vsyncadd [#allocation10], %s437
          %s440 = sshll.u32 [#allocation11], 4
          %s441 = int_to_ptr.vmem [resolvable:$true] %s440
          %443 = dma.hbm_to_vmem [thread:$0]  %s8, 16, %s441, [#allocation10]
        $region44: #{tpu_custom_call.1} parent=11 // pred_fallthru
          _
        // Predicated region
        $region45: #{tpu_custom_call.1} parent=11 // pred_check
          %p444 = pneg %p244
        $region46: #{tpu_custom_call.1} parent=11 // pred_check_branch
          %446 = sbr.rel (%p444) target = $region48
        $region47: #{tpu_custom_call.1} parent=11 // pred_region
          _
        $region48: #{tpu_custom_call.1} parent=11 // pred_fallthru
          _
        // Predicated region
        $region49: #{tpu_custom_call.1} parent=11 // pred_check
          %p447 = pneg %p265
        $region50: #{tpu_custom_call.1} parent=11 // pred_check_branch
          %449 = sbr.rel (%p447) target = $region52
        $region51: #{tpu_custom_call.1} parent=11 // pred_region
          _
        $region52: #{tpu_custom_call.1} parent=11 // pred_fallthru
          _
        // Predicated region
        $region53: #{tpu_custom_call.1} parent=11 // pred_check
          %p450 = pneg %p286
        $region54: #{tpu_custom_call.1} parent=11 // pred_check_branch
          %452 = sbr.rel (%p450) target = $region56
        $region55: #{tpu_custom_call.1} parent=11 // pred_region
          _
        $region56: #{tpu_custom_call.1} parent=11 // pred_fallthru
          _
        // Predicated region
        $region57: #{tpu_custom_call.1} parent=11 // pred_check
          %p453 = pneg %p307
        $region58: #{tpu_custom_call.1} parent=11 // pred_check_branch
          %455 = sbr.rel (%p453) target = $region60
        $region59: #{tpu_custom_call.1} parent=11 // pred_region
          _
        $region60: #{tpu_custom_call.1} parent=11 // pred_fallthru
          _
      $region12: #{tpu_custom_call.1} parent=5 // pred_fallthru
        _
      %p456 = scmp.lt.s32.totalorder %s29, 2
      // Predicated region
      $region61: #{tpu_custom_call.1} parent=5 // pred_check
        %p457 = pneg %p456
      $region62: #{tpu_custom_call.1} parent=5 // pred_check_branch
        %459 = sbr.rel (%p457) target = $region64
      $region63: #{tpu_custom_call.1} parent=5 // pred_region
        // Predicated region
        $region65: #{tpu_custom_call.1} parent=63 // pred_check
          %p460 = pneg %p49
        $region66: #{tpu_custom_call.1} parent=63 // pred_check_branch
          %462 = sbr.rel (%p460) target = $region68
        $region67: #{tpu_custom_call.1} parent=63 // pred_region
          %s463 = smul.u32 2, %s29
          %p464 = scmp.lt.s32.totalorder %s463, 3
          %s465 = scalar_select %p464, %s463, 3
          %s466 = smul.addr %s465, 8
          %s467 = scalar_lea.vmem %s0, %s466
          %s468 = smul.u32 2, %s29
        $region68: #{tpu_custom_call.1} parent=63 // pred_fallthru
          _
      $region64: #{tpu_custom_call.1} parent=5 // pred_fallthru
        _
      %p469 = scmp.le.s32.totalorder 1, %s29
      %p470 = scmp.lt.s32.totalorder %s29, 3
      %p471 = pnand %p469, %p470
      %p472 = pneg %p471
      // Predicated region
      $region69: #{tpu_custom_call.1} parent=5 // pred_check
        _
      $region70: #{tpu_custom_call.1} parent=5 // pred_check_branch
        %474 = sbr.rel (%p471) target = $region72
      $region71: #{tpu_custom_call.1} parent=5 // pred_region
        %s475 = ssub.s32 %s29, 1
        // Predicated region
        $region73: #{tpu_custom_call.1} parent=71 // pred_check
          %p476 = pneg %p118
        $region74: #{tpu_custom_call.1} parent=71 // pred_check_branch
          %478 = sbr.rel (%p476) target = $region76
        $region75: #{tpu_custom_call.1} parent=71 // pred_region
          %479 = dma.done [#allocation4], 4096
        $region76: #{tpu_custom_call.1} parent=71 // pred_fallthru
          _
        // Predicated region
        $region77: #{tpu_custom_call.1} parent=71 // pred_check
          %p480 = pneg %p139
        $region78: #{tpu_custom_call.1} parent=71 // pred_check_branch
          %482 = sbr.rel (%p480) target = $region80
        $region79: #{tpu_custom_call.1} parent=71 // pred_region
          %483 = dma.done [#allocation7], 32
        $region80: #{tpu_custom_call.1} parent=71 // pred_fallthru
          _
        // Predicated region
        $region81: #{tpu_custom_call.1} parent=71 // pred_check
          %p484 = pneg %p160
        $region82: #{tpu_custom_call.1} parent=71 // pred_check_branch
          %486 = sbr.rel (%p484) target = $region84
        $region83: #{tpu_custom_call.1} parent=71 // pred_region
          %487 = dma.done [#allocation7], 2048
        $region84: #{tpu_custom_call.1} parent=71 // pred_fallthru
          _
        // Predicated region
        $region85: #{tpu_custom_call.1} parent=71 // pred_check
          %p488 = pneg %p202
        $region86: #{tpu_custom_call.1} parent=71 // pred_check_branch
          %490 = sbr.rel (%p488) target = $region88
        $region87: #{tpu_custom_call.1} parent=71 // pred_region
          %491 = dma.done [#allocation10], 2048
        $region88: #{tpu_custom_call.1} parent=71 // pred_fallthru
          _
        // Predicated region
        $region89: #{tpu_custom_call.1} parent=71 // pred_check
          %p492 = pneg %p223
        $region90: #{tpu_custom_call.1} parent=71 // pred_check_branch
          %494 = sbr.rel (%p492) target = $region92
        $region91: #{tpu_custom_call.1} parent=71 // pred_region
          %495 = dma.done [#allocation10], 16
        $region92: #{tpu_custom_call.1} parent=71 // pred_fallthru
          _
        %s496 = smul.u32 2, %s34
        %p497 = scmp.lt.s32.totalorder %s496, 3
        %s498 = scalar_select %p497, %s496, 3
        %s499 = smul.addr %s498, 8
        %s500 = scalar_lea.vmem %s0, %s499
        %p501 = pneg %p55
        %p502 = pneg %p52
        %p503 = pneg %p76
        %p504 = pneg %p73
        %p505 = pneg %p97
        %p506 = pneg %p94
        %p507 = pneg %p118
        %p508 = pneg %p115
        %p509 = pneg %p139
        %p510 = pneg %p136
        %p511 = pneg %p160
        %p512 = pneg %p157
        %p513 = pneg %p181
        %p514 = pneg %p178
        %p515 = pneg %p202
        %p516 = pneg %p199
        %p517 = pneg %p223
        %p518 = pneg %p220
        %p519 = pneg %p244
        %p520 = pneg %p241
        %p521 = pneg %p265
        %p522 = pneg %p262
        %p523 = pneg %p286
        %p524 = pneg %p283
        %p525 = pneg %p307
        %p526 = pneg %p304
        %p527 = pneg %p333
        %p528 = pneg %p330
        %s529 = sand.u32 %s320, 1
        %s530 = scalar_lea.sflag [#allocation5], %s529
        %s531 = sand.u32 %s320, 1
        %s532 = smul.addr %s531, 8
        %s533 = scalar_lea.vmem [#allocation12], %s532
        %p534 = pneg %p359
        %p535 = pneg %p356
        %s536 = smul.u32 2, %s34
        %p537 = scmp.lt.s32.totalorder %s536, 3
        %s538 = scalar_select %p537, %s536, 3
        %s539 = smul.addr %s538, 8
        %s540 = scalar_lea.vmem %s14, %s539
        %s541 = smul.u32 2, %s34
        %p542 = scmp.lt.s32.totalorder %s541, 3
        %s543 = scalar_select %p542, %s541, 3
        %s544 = smul.addr %s543, 8
        %s545 = scalar_lea.vmem %s0, %s544
        %s546 = smul.u32 2, %s34
        %s547 = smul.u32 2, %s34
        %s548 = smul.u32 2, %s34
        %p549 = scmp.lt.s32.totalorder %s548, 3
        %s550 = scalar_select %p549, %s548, 3
        %s551 = smul.addr %s550, 8
        %s552 = scalar_lea.vmem %s14, %s551
        %s553 = smul.u32 2, %s34
        %v555 = vld [vmem:[%s545] sm:$0xff]
        %v556 = vld [vmem:[%s545 + $0x8] sm:$0xff]
        %v557 = vpack.c.bf16 %v556, %v555
        %v558 = vld [vmem:[%s1] sm:$0xff]
        %v559 = vld [vmem:[%s1 + $0x8] sm:$0xff]
        %v560 = vld [vmem:[%s1 + $0x10] sm:$0xff]
        %v561 = vld [vmem:[%s1 + $0x18] sm:$0xff]
        %v562 = vld [vmem:[%s1 + $0x20] sm:$0xff]
        %v563 = vld [vmem:[%s1 + $0x28] sm:$0xff]
        %v564 = vld [vmem:[%s1 + $0x30] sm:$0xff]
        %v565 = vld [vmem:[%s1 + $0x38] sm:$0xff]
        %v566 = vld [vmem:[%s2] sm:$0xf]
        %v568 = vlaneseq
        %v569 = vshrl.u32 %v568, 7
        %v570 = vsub.s32 0, %v569
        %v571 = vrot.slane %v566, %v570
        %v572 = vlaneseq
        %v573 = vshrl.u32 %v572, 7
        %v574 = vsub.s32 1, %v573
        %v575 = vrot.slane %v566, %v574
        %v576 = vlaneseq
        %v577 = vshrl.u32 %v576, 7
        %v578 = vsub.s32 2, %v577
        %v579 = vrot.slane %v566, %v578
        %v580 = vlaneseq
        %v581 = vshrl.u32 %v580, 7
        %v582 = vsub.s32 3, %v581
        %v583 = vrot.slane %v566, %v582
        %v596 = vunpack.c.l.b16 %v558
        %v597 = vunpack.c.h.b16 %v558
        %v598 = vunpack.c.l.b16 %v559
        %v599 = vunpack.c.h.b16 %v559
        %v600 = vunpack.c.l.b16 %v560
        %v601 = vunpack.c.h.b16 %v560
        %v602 = vunpack.c.l.b16 %v561
        %v603 = vunpack.c.h.b16 %v561
        %v604 = vunpack.c.l.b16 %v562
        %v605 = vunpack.c.h.b16 %v562
        %v606 = vunpack.c.l.b16 %v563
        %v607 = vunpack.c.h.b16 %v563
        %v608 = vunpack.c.l.b16 %v564
        %v609 = vunpack.c.h.b16 %v564
        %v610 = vunpack.c.l.b16 %v565
        %v611 = vunpack.c.h.b16 %v565
        %v612 = vpack.c.b16 %v600, %v596
        %v613 = vpack.c.b16 %v601, %v597
        %v614 = vpack.c.b16 %v602, %v598
        %v615 = vpack.c.b16 %v603, %v599
        %v616 = vpack.c.b16 %v608, %v604
        %v617 = vpack.c.b16 %v609, %v605
        %v618 = vpack.c.b16 %v610, %v606
        %v619 = vpack.c.b16 %v611, %v607
        %vm628 = vcmask 261120
        %v630 = vsel %vm628, %v557, 0
        %632 = vmatprep.subr.bf16.mxu0 %v613
        %633 = vmatpush1.bf16.msra.mxu0 %v612
        %634 = vmatprep.subr.bf16.mxu0 %v617
        %635 = vmatpush1.bf16.msra.mxu0 %v616
        %636 = vmatprep.subr.bf16.mxu0 0
        %637 = vmatpush1.bf16.msra.mxu0 0
        %638 = vmatprep.subr.bf16.mxu0 0
        %639 = vmatpush1.bf16.msra.mxu0 0
        %640 = vmatprep.subr.bf16.mxu0 0
        %641 = vmatpush1.bf16.msra.mxu0 0
        %642 = vmatprep.subr.bf16.mxu0 0
        %643 = vmatpush1.bf16.msra.mxu0 0
        %644 = vmatprep.subr.bf16.mxu0 0
        %645 = vmatpush1.bf16.msra.mxu0 0
        %646 = vmatprep.subr.bf16.mxu0 0
        %647 = vmatpush1.bf16.msra.mxu0 0
        %648 = vmatprep.subr.bf16.mxu0 0
        %649 = vmatpush1.bf16.msra.mxu0 0
        %650 = vmatprep.subr.bf16.mxu0 0
        %651 = vmatpush1.bf16.msra.mxu0 0
        %652 = vmatprep.subr.bf16.mxu0 0
        %653 = vmatpush1.bf16.msra.mxu0 0
        %654 = vmatprep.subr.bf16.mxu0 0
        %655 = vmatpush1.bf16.msra.mxu0 0
        %656 = vmatprep.subr.bf16.mxu0 0
        %657 = vmatpush1.bf16.msra.mxu0 0
        %658 = vmatprep.subr.bf16.mxu0 0
        %659 = vmatpush1.bf16.msra.mxu0 0
        %660 = vmatprep.subr.bf16.mxu0 0
        %661 = vmatpush1.bf16.msra.mxu0 0
        %662 = vmatprep.subr.bf16.mxu0 0
        %663 = vmatpush1.bf16.msra.mxu0 0
        %664 = vmatprep.mubr.bf16.mxu0 0
        %665 = vmatmul.mubr.bf16.gmra.mrb[0].mxu0 %v630
        %v666 = vpop.f32.mrb[0].mxu0
        %v667 = vadd.f32 %v571, %v666
        %v668 = vpop.f32.mrb[0].mxu0
        %v669 = vadd.f32 %v575, %v668
        %v670 = vpop.f32.mrb[0].mxu0
        %v671 = vadd.f32 %v571, %v670
        %v672 = vpop.f32.mrb[0].mxu0
        %v673 = vadd.f32 %v575, %v672
        %674 = vdwg.mxu0
        %675 = vmatprep.subr.bf16.mxu0 %v615
        %676 = vmatpush1.bf16.msra.mxu0 %v614
        %677 = vmatprep.subr.bf16.mxu0 %v619
        %678 = vmatpush1.bf16.msra.mxu0 %v618
        %679 = vmatprep.subr.bf16.mxu0 0
        %680 = vmatpush1.bf16.msra.mxu0 0
        %681 = vmatprep.subr.bf16.mxu0 0
        %682 = vmatpush1.bf16.msra.mxu0 0
        %683 = vmatprep.subr.bf16.mxu0 0
        %684 = vmatpush1.bf16.msra.mxu0 0
        %685 = vmatprep.subr.bf16.mxu0 0
        %686 = vmatpush1.bf16.msra.mxu0 0
        %687 = vmatprep.subr.bf16.mxu0 0
        %688 = vmatpush1.bf16.msra.mxu0 0
        %689 = vmatprep.subr.bf16.mxu0 0
        %690 = vmatpush1.bf16.msra.mxu0 0
        %691 = vmatprep.subr.bf16.mxu0 0
        %692 = vmatpush1.bf16.msra.mxu0 0
        %693 = vmatprep.subr.bf16.mxu0 0
        %694 = vmatpush1.bf16.msra.mxu0 0
        %695 = vmatprep.subr.bf16.mxu0 0
        %696 = vmatpush1.bf16.msra.mxu0 0
        %697 = vmatprep.subr.bf16.mxu0 0
        %698 = vmatpush1.bf16.msra.mxu0 0
        %699 = vmatprep.subr.bf16.mxu0 0
        %700 = vmatpush1.bf16.msra.mxu0 0
        %701 = vmatprep.subr.bf16.mxu0 0
        %702 = vmatpush1.bf16.msra.mxu0 0
        %703 = vmatprep.subr.bf16.mxu0 0
        %704 = vmatpush1.bf16.msra.mxu0 0
        %705 = vmatprep.subr.bf16.mxu0 0
        %706 = vmatpush1.bf16.msra.mxu0 0
        %707 = vmatprep.mubr.bf16.mxu0 0
        %708 = vmatmul.mubr.bf16.gmra.mrb[0].mxu0 %v630
        %v709 = vpop.f32.mrb[0].mxu0
        %v710 = vadd.f32 %v579, %v709
        %v711 = vpop.f32.mrb[0].mxu0
        %v712 = vadd.f32 %v583, %v711
        %v713 = vpop.f32.mrb[0].mxu0
        %v714 = vadd.f32 %v579, %v713
        %v715 = vpop.f32.mrb[0].mxu0
        %v716 = vadd.f32 %v583, %v715
        %717 = vdwg.mxu0
        %v718 = vmax.f32 %v667, 0.0
        %v719 = vmax.f32 %v669, 0.0
        %v720 = vmax.f32 %v710, 0.0
        %v721 = vmax.f32 %v712, 0.0
        %v722 = vmax.f32 %v671, 0.0
        %v723 = vmax.f32 %v673, 0.0
        %v724 = vmax.f32 %v714, 0.0
        %v725 = vmax.f32 %v716, 0.0
        %v726 = vpack.c.bf16 %v722, %v718
        %v727 = vpack.c.bf16 %v723, %v719
        %v728 = vpack.c.bf16 %v724, %v720
        %v729 = vpack.c.bf16 %v725, %v721
        %v730 = vld [vmem:[#allocation3] sm:$0xff]
        %v731 = vld [vmem:[#allocation3 + $0x8] sm:$0xff]
        %v732 = vld [vmem:[#allocation3 + $0x10] sm:$0xff]
        %v733 = vld [vmem:[#allocation3 + $0x18] sm:$0xff]
        %v734 = vld [vmem:[#allocation3 + $0x20] sm:$0xff]
        %v735 = vld [vmem:[#allocation3 + $0x28] sm:$0xff]
        %v736 = vld [vmem:[#allocation3 + $0x30] sm:$0xff]
        %v737 = vld [vmem:[#allocation3 + $0x38] sm:$0xff]
        %v738 = vld [vmem:[#allocation3 + $0x40] sm:$0xff]
        %v739 = vld [vmem:[#allocation3 + $0x48] sm:$0xff]
        %v740 = vld [vmem:[#allocation3 + $0x50] sm:$0xff]
        %v741 = vld [vmem:[#allocation3 + $0x58] sm:$0xff]
        %v742 = vld [vmem:[#allocation3 + $0x60] sm:$0xff]
        %v743 = vld [vmem:[#allocation3 + $0x68] sm:$0xff]
        %v744 = vld [vmem:[#allocation3 + $0x70] sm:$0xff]
        %v745 = vld [vmem:[#allocation3 + $0x78] sm:$0xff]
        %v746 = vld [vmem:[#allocation3 + $0x80] sm:$0xff]
        %v747 = vld [vmem:[#allocation3 + $0x88] sm:$0xff]
        %v748 = vld [vmem:[#allocation3 + $0x90] sm:$0xff]
        %v749 = vld [vmem:[#allocation3 + $0x98] sm:$0xff]
        %v750 = vld [vmem:[#allocation3 + $0xa0] sm:$0xff]
        %v751 = vld [vmem:[#allocation3 + $0xa8] sm:$0xff]
        %v752 = vld [vmem:[#allocation3 + $0xb0] sm:$0xff]
        %v753 = vld [vmem:[#allocation3 + $0xb8] sm:$0xff]
        %v754 = vld [vmem:[#allocation3 + $0xc0] sm:$0xff]
        %v755 = vld [vmem:[#allocation3 + $0xc8] sm:$0xff]
        %v756 = vld [vmem:[#allocation3 + $0xd0] sm:$0xff]
        %v757 = vld [vmem:[#allocation3 + $0xd8] sm:$0xff]
        %v758 = vld [vmem:[#allocation3 + $0xe0] sm:$0xff]
        %v759 = vld [vmem:[#allocation3 + $0xe8] sm:$0xff]
        %v760 = vld [vmem:[#allocation3 + $0xf0] sm:$0xff]
        %v761 = vld [vmem:[#allocation3 + $0xf8] sm:$0xff]
        %v762 = vld [vmem:[#allocation6] sm:$0x3]
        %v764 = vlaneseq
        %v765 = vshrl.u32 %v764, 7
        %v766 = vsub.s32 0, %v765
        %v767 = vrot.slane %v762, %v766
        %v768 = vlaneseq
        %v769 = vshrl.u32 %v768, 7
        %v770 = vsub.s32 1, %v769
        %v771 = vrot.slane %v762, %v770
        %v806 = vunpack.c.l.b16 %v730
        %v807 = vunpack.c.h.b16 %v730
        %v808 = vunpack.c.l.b16 %v731
        %v809 = vunpack.c.h.b16 %v731
        %v810 = vunpack.c.l.b16 %v732
        %v811 = vunpack.c.h.b16 %v732
        %v812 = vunpack.c.l.b16 %v733
        %v813 = vunpack.c.h.b16 %v733
        %v814 = vunpack.c.l.b16 %v734
        %v815 = vunpack.c.h.b16 %v734
        %v816 = vunpack.c.l.b16 %v735
        %v817 = vunpack.c.h.b16 %v735
        %v818 = vunpack.c.l.b16 %v736
        %v819 = vunpack.c.h.b16 %v736
        %v820 = vunpack.c.l.b16 %v737
        %v821 = vunpack.c.h.b16 %v737
        %v822 = vunpack.c.l.b16 %v738
        %v823 = vunpack.c.h.b16 %v738
        %v824 = vunpack.c.l.b16 %v739
        %v825 = vunpack.c.h.b16 %v739
        %v826 = vunpack.c.l.b16 %v740
        %v827 = vunpack.c.h.b16 %v740
        %v828 = vunpack.c.l.b16 %v741
        %v829 = vunpack.c.h.b16 %v741
        %v830 = vunpack.c.l.b16 %v742
        %v831 = vunpack.c.h.b16 %v742
        %v832 = vunpack.c.l.b16 %v743
        %v833 = vunpack.c.h.b16 %v743
        %v834 = vunpack.c.l.b16 %v744
        %v835 = vunpack.c.h.b16 %v744
        %v836 = vunpack.c.l.b16 %v745
        %v837 = vunpack.c.h.b16 %v745
        %v838 = vunpack.c.l.b16 %v746
        %v839 = vunpack.c.h.b16 %v746
        %v840 = vunpack.c.l.b16 %v747
        %v841 = vunpack.c.h.b16 %v747
        %v842 = vunpack.c.l.b16 %v748
        %v843 = vunpack.c.h.b16 %v748
        %v844 = vunpack.c.l.b16 %v749
        %v845 = vunpack.c.h.b16 %v749
        %v846 = vunpack.c.l.b16 %v750
        %v847 = vunpack.c.h.b16 %v750
        %v848 = vunpack.c.l.b16 %v751
        %v849 = vunpack.c.h.b16 %v751
        %v850 = vunpack.c.l.b16 %v752
        %v851 = vunpack.c.h.b16 %v752
        %v852 = vunpack.c.l.b16 %v753
        %v853 = vunpack.c.h.b16 %v753
        %v854 = vunpack.c.l.b16 %v754
        %v855 = vunpack.c.h.b16 %v754
        %v856 = vunpack.c.l.b16 %v755
        %v857 = vunpack.c.h.b16 %v755
        %v858 = vunpack.c.l.b16 %v756
        %v859 = vunpack.c.h.b16 %v756
        %v860 = vunpack.c.l.b16 %v757
        %v861 = vunpack.c.h.b16 %v757
        %v862 = vunpack.c.l.b16 %v758
        %v863 = vunpack.c.h.b16 %v758
        %v864 = vunpack.c.l.b16 %v759
        %v865 = vunpack.c.h.b16 %v759
        %v866 = vunpack.c.l.b16 %v760
        %v867 = vunpack.c.h.b16 %v760
        %v868 = vunpack.c.l.b16 %v761
        %v869 = vunpack.c.h.b16 %v761
        %v870 = vpack.c.b16 %v808, %v806
        %v871 = vpack.c.b16 %v809, %v807
        %v872 = vpack.c.b16 %v812, %v810
        %v873 = vpack.c.b16 %v813, %v811
        %v874 = vpack.c.b16 %v816, %v814
        %v875 = vpack.c.b16 %v817, %v815
        %v876 = vpack.c.b16 %v820, %v818
        %v877 = vpack.c.b16 %v821, %v819
        %v878 = vpack.c.b16 %v824, %v822
        %v879 = vpack.c.b16 %v825, %v823
        %v880 = vpack.c.b16 %v828, %v826
        %v881 = vpack.c.b16 %v829, %v827
        %v882 = vpack.c.b16 %v832, %v830
        %v883 = vpack.c.b16 %v833, %v831
        %v884 = vpack.c.b16 %v836, %v834
        %v885 = vpack.c.b16 %v837, %v835
        %v886 = vpack.c.b16 %v840, %v838
        %v887 = vpack.c.b16 %v841, %v839
        %v888 = vpack.c.b16 %v844, %v842
        %v889 = vpack.c.b16 %v845, %v843
        %v890 = vpack.c.b16 %v848, %v846
        %v891 = vpack.c.b16 %v849, %v847
        %v892 = vpack.c.b16 %v852, %v850
        %v893 = vpack.c.b16 %v853, %v851
        %v894 = vpack.c.b16 %v856, %v854
        %v895 = vpack.c.b16 %v857, %v855
        %v896 = vpack.c.b16 %v860, %v858
        %v897 = vpack.c.b16 %v861, %v859
        %v898 = vpack.c.b16 %v864, %v862
        %v899 = vpack.c.b16 %v865, %v863
        %v900 = vpack.c.b16 %v868, %v866
        %v901 = vpack.c.b16 %v869, %v867
        %934 = vmatprep.subr.bf16.mxu0 %v871
        %935 = vmatpush1.bf16.msra.mxu0 %v870
        %936 = vmatprep.subr.bf16.mxu0 %v873
        %937 = vmatpush1.bf16.msra.mxu0 %v872
        %938 = vmatprep.subr.bf16.mxu0 %v875
        %939 = vmatpush1.bf16.msra.mxu0 %v874
        %940 = vmatprep.subr.bf16.mxu0 %v877
        %941 = vmatpush1.bf16.msra.mxu0 %v876
        %942 = vmatprep.subr.bf16.mxu0 %v879
        %943 = vmatpush1.bf16.msra.mxu0 %v878
        %944 = vmatprep.subr.bf16.mxu0 %v881
        %945 = vmatpush1.bf16.msra.mxu0 %v880
        %946 = vmatprep.subr.bf16.mxu0 %v883
        %947 = vmatpush1.bf16.msra.mxu0 %v882
        %948 = vmatprep.subr.bf16.mxu0 %v885
        %949 = vmatpush1.bf16.msra.mxu0 %v884
        %950 = vmatprep.subr.bf16.mxu0 %v887
        %951 = vmatpush1.bf16.msra.mxu0 %v886
        %952 = vmatprep.subr.bf16.mxu0 %v889
        %953 = vmatpush1.bf16.msra.mxu0 %v888
        %954 = vmatprep.subr.bf16.mxu0 %v891
        %955 = vmatpush1.bf16.msra.mxu0 %v890
        %956 = vmatprep.subr.bf16.mxu0 %v893
        %957 = vmatpush1.bf16.msra.mxu0 %v892
        %958 = vmatprep.subr.bf16.mxu0 %v895
        %959 = vmatpush1.bf16.msra.mxu0 %v894
        %960 = vmatprep.subr.bf16.mxu0 %v897
        %961 = vmatpush1.bf16.msra.mxu0 %v896
        %962 = vmatprep.subr.bf16.mxu0 %v899
        %963 = vmatpush1.bf16.msra.mxu0 %v898
        %964 = vmatprep.subr.bf16.mxu0 %v901
        %965 = vmatpush1.bf16.msra.mxu0 %v900
        %966 = vmatprep.mubr.bf16.mxu0 %v727
        %967 = vmatmul.mubr.bf16.gmra.mrb[0].mxu0 %v726
        %v968 = vpop.f32.mrb[0].mxu0
        %v969 = vadd.f32 %v767, %v968
        %v970 = vpop.f32.mrb[0].mxu0
        %v971 = vadd.f32 %v771, %v970
        %v972 = vpop.f32.mrb[0].mxu0
        %v973 = vadd.f32 %v767, %v972
        %v974 = vpop.f32.mrb[0].mxu0
        %v975 = vadd.f32 %v771, %v974
        %976 = vdwg.mxu0
        %v977 = vmax.f32 %v969, 0.0
        %v978 = vmax.f32 %v971, 0.0
        %v979 = vmax.f32 %v973, 0.0
        %v980 = vmax.f32 %v975, 0.0
        %v981 = vpack.c.bf16 %v979, %v977
        %v982 = vpack.c.bf16 %v980, %v978
        %v983 = vld [vmem:[#allocation8] sm:$0xf]
        %v984 = vld [vmem:[#allocation8 + $0x4] sm:$0xf]
        %v985 = vld [vmem:[#allocation8 + $0x8] sm:$0xf]
        %v986 = vld [vmem:[#allocation8 + $0xc] sm:$0xf]
        %v987 = vld [vmem:[#allocation8 + $0x10] sm:$0xf]
        %v988 = vld [vmem:[#allocation8 + $0x14] sm:$0xf]
        %v989 = vld [vmem:[#allocation8 + $0x18] sm:$0xf]
        %v990 = vld [vmem:[#allocation8 + $0x1c] sm:$0xf]
        %v991 = vld [vmem:[#allocation8 + $0x20] sm:$0xf]
        %v992 = vld [vmem:[#allocation8 + $0x24] sm:$0xf]
        %v993 = vld [vmem:[#allocation8 + $0x28] sm:$0xf]
        %v994 = vld [vmem:[#allocation8 + $0x2c] sm:$0xf]
        %v995 = vld [vmem:[#allocation8 + $0x30] sm:$0xf]
        %v996 = vld [vmem:[#allocation8 + $0x34] sm:$0xf]
        %v997 = vld [vmem:[#allocation8 + $0x38] sm:$0xf]
        %v998 = vld [vmem:[#allocation8 + $0x3c] sm:$0xf]
        %v999 = vld [vmem:[#allocation8 + $0x40] sm:$0xf]
        %v1000 = vld [vmem:[#allocation8 + $0x44] sm:$0xf]
        %v1001 = vld [vmem:[#allocation8 + $0x48] sm:$0xf]
        %v1002 = vld [vmem:[#allocation8 + $0x4c] sm:$0xf]
        %v1003 = vld [vmem:[#allocation8 + $0x50] sm:$0xf]
        %v1004 = vld [vmem:[#allocation8 + $0x54] sm:$0xf]
        %v1005 = vld [vmem:[#allocation8 + $0x58] sm:$0xf]
        %v1006 = vld [vmem:[#allocation8 + $0x5c] sm:$0xf]
        %v1007 = vld [vmem:[#allocation8 + $0x60] sm:$0xf]
        %v1008 = vld [vmem:[#allocation8 + $0x64] sm:$0xf]
        %v1009 = vld [vmem:[#allocation8 + $0x68] sm:$0xf]
        %v1010 = vld [vmem:[#allocation8 + $0x6c] sm:$0xf]
        %v1011 = vld [vmem:[#allocation8 + $0x70] sm:$0xf]
        %v1012 = vld [vmem:[#allocation8 + $0x74] sm:$0xf]
        %v1013 = vld [vmem:[#allocation8 + $0x78] sm:$0xf]
        %v1014 = vld [vmem:[#allocation8 + $0x7c] sm:$0xf]
        %v1015 = vld [vmem:[%s6] sm:$0x1]
        %v1017 = vlaneseq
        %v1018 = vshrl.u32 %v1017, 7
        %v1019 = vsub.s32 0, %v1018
        %v1020 = vrot.slane %v1015, %v1019
        %v1054 = vunpack.c.l.b16 %v983
        %v1055 = vunpack.c.l.b16 %v984
        %v1056 = vunpack.c.l.b16 %v985
        %v1057 = vunpack.c.l.b16 %v986
        %v1058 = vunpack.c.l.b16 %v987
        %v1059 = vunpack.c.l.b16 %v988
        %v1060 = vunpack.c.l.b16 %v989
        %v1061 = vunpack.c.l.b16 %v990
        %v1062 = vunpack.c.l.b16 %v991
        %v1063 = vunpack.c.l.b16 %v992
        %v1064 = vunpack.c.l.b16 %v993
        %v1065 = vunpack.c.l.b16 %v994
        %v1066 = vunpack.c.l.b16 %v995
        %v1067 = vunpack.c.l.b16 %v996
        %v1068 = vunpack.c.l.b16 %v997
        %v1069 = vunpack.c.l.b16 %v998
        %v1070 = vunpack.c.l.b16 %v999
        %v1071 = vunpack.c.l.b16 %v1000
        %v1072 = vunpack.c.l.b16 %v1001
        %v1073 = vunpack.c.l.b16 %v1002
        %v1074 = vunpack.c.l.b16 %v1003
        %v1075 = vunpack.c.l.b16 %v1004
        %v1076 = vunpack.c.l.b16 %v1005
        %v1077 = vunpack.c.l.b16 %v1006
        %v1078 = vunpack.c.l.b16 %v1007
        %v1079 = vunpack.c.l.b16 %v1008
        %v1080 = vunpack.c.l.b16 %v1009
        %v1081 = vunpack.c.l.b16 %v1010
        %v1082 = vunpack.c.l.b16 %v1011
        %v1083 = vunpack.c.l.b16 %v1012
        %v1084 = vunpack.c.l.b16 %v1013
        %v1085 = vunpack.c.l.b16 %v1014
        %v1086 = vpack.c.b16 %v1055, %v1054
        %v1087 = vpack.c.b16 %v1057, %v1056
        %v1088 = vpack.c.b16 %v1059, %v1058
        %v1089 = vpack.c.b16 %v1061, %v1060
        %v1090 = vpack.c.b16 %v1063, %v1062
        %v1091 = vpack.c.b16 %v1065, %v1064
        %v1092 = vpack.c.b16 %v1067, %v1066
        %v1093 = vpack.c.b16 %v1069, %v1068
        %v1094 = vpack.c.b16 %v1071, %v1070
        %v1095 = vpack.c.b16 %v1073, %v1072
        %v1096 = vpack.c.b16 %v1075, %v1074
        %v1097 = vpack.c.b16 %v1077, %v1076
        %v1098 = vpack.c.b16 %v1079, %v1078
        %v1099 = vpack.c.b16 %v1081, %v1080
        %v1100 = vpack.c.b16 %v1083, %v1082
        %v1101 = vpack.c.b16 %v1085, %v1084
        %1118 = vmatprep.subr.bf16.mxu0 0
        %1119 = vmatpush1.bf16.msra.mxu0 %v1086
        %1120 = vmatprep.subr.bf16.mxu0 0
        %1121 = vmatpush1.bf16.msra.mxu0 %v1087
        %1122 = vmatprep.subr.bf16.mxu0 0
        %1123 = vmatpush1.bf16.msra.mxu0 %v1088
        %1124 = vmatprep.subr.bf16.mxu0 0
        %1125 = vmatpush1.bf16.msra.mxu0 %v1089
        %1126 = vmatprep.subr.bf16.mxu0 0
        %1127 = vmatpush1.bf16.msra.mxu0 %v1090
        %1128 = vmatprep.subr.bf16.mxu0 0
        %1129 = vmatpush1.bf16.msra.mxu0 %v1091
        %1130 = vmatprep.subr.bf16.mxu0 0
        %1131 = vmatpush1.bf16.msra.mxu0 %v1092
        %1132 = vmatprep.subr.bf16.mxu0 0
        %1133 = vmatpush1.bf16.msra.mxu0 %v1093
        %1134 = vmatprep.subr.bf16.mxu0 0
        %1135 = vmatpush1.bf16.msra.mxu0 %v1094
        %1136 = vmatprep.subr.bf16.mxu0 0
        %1137 = vmatpush1.bf16.msra.mxu0 %v1095
        %1138 = vmatprep.subr.bf16.mxu0 0
        %1139 = vmatpush1.bf16.msra.mxu0 %v1096
        %1140 = vmatprep.subr.bf16.mxu0 0
        %1141 = vmatpush1.bf16.msra.mxu0 %v1097
        %1142 = vmatprep.subr.bf16.mxu0 0
        %1143 = vmatpush1.bf16.msra.mxu0 %v1098
        %1144 = vmatprep.subr.bf16.mxu0 0
        %1145 = vmatpush1.bf16.msra.mxu0 %v1099
        %1146 = vmatprep.subr.bf16.mxu0 0
        %1147 = vmatpush1.bf16.msra.mxu0 %v1100
        %1148 = vmatprep.subr.bf16.mxu0 0
        %1149 = vmatpush1.bf16.msra.mxu0 %v1101
        %1150 = vmatprep.mubr.bf16.mxu0 %v982
        %1151 = vmatmul.mubr.bf16.gmra.mrb[0].mxu0 %v981
        %v1152 = vpop.f32.mrb[0].mxu0
        %v1153 = vadd.f32 %v1020, %v1152
        %v1154 = vpop.f32.mrb[0].mxu0
        %v1155 = vpop.f32.mrb[0].mxu0
        %v1156 = vadd.f32 %v1020, %v1155
        %v1157 = vpop.f32.mrb[0].mxu0
        %1158 = vdwg.mxu0
        %v1159 = vpack.c.bf16 %v1156, %v1153
        %v1161 = vunpack.c.l.b16 %v1159
        %v1162 = vunpack.c.h.b16 %v1159
        %v1163 = vpack.c.b16 %v1161, %v1161
        %v1164 = vpack.c.b16 %v1162, %v1162
        %1167 = vst [vmem:[%s533] sm:$0xf] %v1163
        %1168 = vst [vmem:[%s533 + $0x4] sm:$0xf] %v1164
        %v1169 = vld [vmem:[#allocation9] sm:$0xf]
        %v1170 = vld [vmem:[#allocation9 + $0x4] sm:$0xf]
        %v1171 = vld [vmem:[#allocation9 + $0x8] sm:$0xf]
        %v1172 = vld [vmem:[#allocation9 + $0xc] sm:$0xf]
        %v1173 = vld [vmem:[#allocation9 + $0x10] sm:$0xf]
        %v1174 = vld [vmem:[#allocation9 + $0x14] sm:$0xf]
        %v1175 = vld [vmem:[#allocation9 + $0x18] sm:$0xf]
        %v1176 = vld [vmem:[#allocation9 + $0x1c] sm:$0xf]
        %v1177 = vld [vmem:[#allocation9 + $0x20] sm:$0xf]
        %v1178 = vld [vmem:[#allocation9 + $0x24] sm:$0xf]
        %v1179 = vld [vmem:[#allocation9 + $0x28] sm:$0xf]
        %v1180 = vld [vmem:[#allocation9 + $0x2c] sm:$0xf]
        %v1181 = vld [vmem:[#allocation9 + $0x30] sm:$0xf]
        %v1182 = vld [vmem:[#allocation9 + $0x34] sm:$0xf]
        %v1183 = vld [vmem:[#allocation9 + $0x38] sm:$0xf]
        %v1184 = vld [vmem:[#allocation9 + $0x3c] sm:$0xf]
        %v1185 = vld [vmem:[#allocation9 + $0x40] sm:$0xf]
        %v1186 = vld [vmem:[#allocation9 + $0x44] sm:$0xf]
        %v1187 = vld [vmem:[#allocation9 + $0x48] sm:$0xf]
        %v1188 = vld [vmem:[#allocation9 + $0x4c] sm:$0xf]
        %v1189 = vld [vmem:[#allocation9 + $0x50] sm:$0xf]
        %v1190 = vld [vmem:[#allocation9 + $0x54] sm:$0xf]
        %v1191 = vld [vmem:[#allocation9 + $0x58] sm:$0xf]
        %v1192 = vld [vmem:[#allocation9 + $0x5c] sm:$0xf]
        %v1193 = vld [vmem:[#allocation9 + $0x60] sm:$0xf]
        %v1194 = vld [vmem:[#allocation9 + $0x64] sm:$0xf]
        %v1195 = vld [vmem:[#allocation9 + $0x68] sm:$0xf]
        %v1196 = vld [vmem:[#allocation9 + $0x6c] sm:$0xf]
        %v1197 = vld [vmem:[#allocation9 + $0x70] sm:$0xf]
        %v1198 = vld [vmem:[#allocation9 + $0x74] sm:$0xf]
        %v1199 = vld [vmem:[#allocation9 + $0x78] sm:$0xf]
        %v1200 = vld [vmem:[#allocation9 + $0x7c] sm:$0xf]
        %v1201 = vld [vmem:[#allocation11] sm:$0x1]
        %v1203 = vlaneseq
        %v1204 = vshrl.u32 %v1203, 7
        %v1205 = vsub.s32 0, %v1204
        %v1206 = vrot.slane %v1201, %v1205
        %v1240 = vunpack.c.l.b16 %v1169
        %v1241 = vunpack.c.l.b16 %v1170
        %v1242 = vunpack.c.l.b16 %v1171
        %v1243 = vunpack.c.l.b16 %v1172
        %v1244 = vunpack.c.l.b16 %v1173
        %v1245 = vunpack.c.l.b16 %v1174
        %v1246 = vunpack.c.l.b16 %v1175
        %v1247 = vunpack.c.l.b16 %v1176
        %v1248 = vunpack.c.l.b16 %v1177
        %v1249 = vunpack.c.l.b16 %v1178
        %v1250 = vunpack.c.l.b16 %v1179
        %v1251 = vunpack.c.l.b16 %v1180
        %v1252 = vunpack.c.l.b16 %v1181
        %v1253 = vunpack.c.l.b16 %v1182
        %v1254 = vunpack.c.l.b16 %v1183
        %v1255 = vunpack.c.l.b16 %v1184
        %v1256 = vunpack.c.l.b16 %v1185
        %v1257 = vunpack.c.l.b16 %v1186
        %v1258 = vunpack.c.l.b16 %v1187
        %v1259 = vunpack.c.l.b16 %v1188
        %v1260 = vunpack.c.l.b16 %v1189
        %v1261 = vunpack.c.l.b16 %v1190
        %v1262 = vunpack.c.l.b16 %v1191
        %v1263 = vunpack.c.l.b16 %v1192
        %v1264 = vunpack.c.l.b16 %v1193
        %v1265 = vunpack.c.l.b16 %v1194
        %v1266 = vunpack.c.l.b16 %v1195
        %v1267 = vunpack.c.l.b16 %v1196
        %v1268 = vunpack.c.l.b16 %v1197
        %v1269 = vunpack.c.l.b16 %v1198
        %v1270 = vunpack.c.l.b16 %v1199
        %v1271 = vunpack.c.l.b16 %v1200
        %v1272 = vpack.c.b16 %v1241, %v1240
        %v1273 = vpack.c.b16 %v1243, %v1242
        %v1274 = vpack.c.b16 %v1245, %v1244
        %v1275 = vpack.c.b16 %v1247, %v1246
        %v1276 = vpack.c.b16 %v1249, %v1248
        %v1277 = vpack.c.b16 %v1251, %v1250
        %v1278 = vpack.c.b16 %v1253, %v1252
        %v1279 = vpack.c.b16 %v1255, %v1254
        %v1280 = vpack.c.b16 %v1257, %v1256
        %v1281 = vpack.c.b16 %v1259, %v1258
        %v1282 = vpack.c.b16 %v1261, %v1260
        %v1283 = vpack.c.b16 %v1263, %v1262
        %v1284 = vpack.c.b16 %v1265, %v1264
        %v1285 = vpack.c.b16 %v1267, %v1266
        %v1286 = vpack.c.b16 %v1269, %v1268
        %v1287 = vpack.c.b16 %v1271, %v1270
        %1304 = vmatprep.subr.bf16.mxu0 0
        %1305 = vmatpush1.bf16.msra.mxu0 %v1272
        %1306 = vmatprep.subr.bf16.mxu0 0
        %1307 = vmatpush1.bf16.msra.mxu0 %v1273
        %1308 = vmatprep.subr.bf16.mxu0 0
        %1309 = vmatpush1.bf16.msra.mxu0 %v1274
        %1310 = vmatprep.subr.bf16.mxu0 0
        %1311 = vmatpush1.bf16.msra.mxu0 %v1275
        %1312 = vmatprep.subr.bf16.mxu0 0
        %1313 = vmatpush1.bf16.msra.mxu0 %v1276
        %1314 = vmatprep.subr.bf16.mxu0 0
        %1315 = vmatpush1.bf16.msra.mxu0 %v1277
        %1316 = vmatprep.subr.bf16.mxu0 0
        %1317 = vmatpush1.bf16.msra.mxu0 %v1278
        %1318 = vmatprep.subr.bf16.mxu0 0
        %1319 = vmatpush1.bf16.msra.mxu0 %v1279
        %1320 = vmatprep.subr.bf16.mxu0 0
        %1321 = vmatpush1.bf16.msra.mxu0 %v1280
        %1322 = vmatprep.subr.bf16.mxu0 0
        %1323 = vmatpush1.bf16.msra.mxu0 %v1281
        %1324 = vmatprep.subr.bf16.mxu0 0
        %1325 = vmatpush1.bf16.msra.mxu0 %v1282
        %1326 = vmatprep.subr.bf16.mxu0 0
        %1327 = vmatpush1.bf16.msra.mxu0 %v1283
        %1328 = vmatprep.subr.bf16.mxu0 0
        %1329 = vmatpush1.bf16.msra.mxu0 %v1284
        %1330 = vmatprep.subr.bf16.mxu0 0
        %1331 = vmatpush1.bf16.msra.mxu0 %v1285
        %1332 = vmatprep.subr.bf16.mxu0 0
        %1333 = vmatpush1.bf16.msra.mxu0 %v1286
        %1334 = vmatprep.subr.bf16.mxu0 0
        %1335 = vmatpush1.bf16.msra.mxu0 %v1287
        %1336 = vmatprep.mubr.bf16.mxu0 %v729
        %1337 = vmatmul.mubr.bf16.gmra.mrb[0].mxu0 %v728
        %v1338 = vpop.f32.mrb[0].mxu0
        %v1339 = vadd.f32 %v1206, %v1338
        %v1340 = vpop.f32.mrb[0].mxu0
        %v1341 = vpop.f32.mrb[0].mxu0
        %v1342 = vadd.f32 %v1206, %v1341
        %v1343 = vpop.f32.mrb[0].mxu0
        %1344 = vdwg.mxu0
        %v1345 = vmax.f32 %v1339, 0.0
        %v1346 = vmax.f32 %v1342, 0.0
        %v1347 = vpack.c.bf16 %v1346, %v1345
        %v1348 = vld [vmem:[%s9] sm:$0xf]
        %v1349 = vld [vmem:[%s9 + $0x4] sm:$0xf]
        %v1350 = vld [vmem:[%s9 + $0x8] sm:$0xf]
        %v1351 = vld [vmem:[%s9 + $0xc] sm:$0xf]
        %v1352 = vld [vmem:[%s9 + $0x10] sm:$0xf]
        %v1353 = vld [vmem:[%s9 + $0x14] sm:$0xf]
        %v1354 = vld [vmem:[%s9 + $0x18] sm:$0xf]
        %v1355 = vld [vmem:[%s9 + $0x1c] sm:$0xf]
        %v1356 = vld [vmem:[%s9 + $0x20] sm:$0xf]
        %v1357 = vld [vmem:[%s9 + $0x24] sm:$0xf]
        %v1358 = vld [vmem:[%s9 + $0x28] sm:$0xf]
        %v1359 = vld [vmem:[%s9 + $0x2c] sm:$0xf]
        %v1360 = vld [vmem:[%s9 + $0x30] sm:$0xf]
        %v1361 = vld [vmem:[%s9 + $0x34] sm:$0xf]
        %v1362 = vld [vmem:[%s9 + $0x38] sm:$0xf]
        %v1363 = vld [vmem:[%s9 + $0x3c] sm:$0xf]
        %v1364 = vld [vmem:[%s10] sm:$0x1]
        %v1366 = vlaneseq
        %v1367 = vshrl.u32 %v1366, 7
        %v1368 = vsub.s32 0, %v1367
        %v1369 = vrot.slane %v1364, %v1368
        %v1387 = vunpack.c.l.b16 %v1348
        %v1388 = vunpack.c.l.b16 %v1349
        %v1389 = vunpack.c.l.b16 %v1350
        %v1390 = vunpack.c.l.b16 %v1351
        %v1391 = vunpack.c.l.b16 %v1352
        %v1392 = vunpack.c.l.b16 %v1353
        %v1393 = vunpack.c.l.b16 %v1354
        %v1394 = vunpack.c.l.b16 %v1355
        %v1395 = vunpack.c.l.b16 %v1356
        %v1396 = vunpack.c.l.b16 %v1357
        %v1397 = vunpack.c.l.b16 %v1358
        %v1398 = vunpack.c.l.b16 %v1359
        %v1399 = vunpack.c.l.b16 %v1360
        %v1400 = vunpack.c.l.b16 %v1361
        %v1401 = vunpack.c.l.b16 %v1362
        %v1402 = vunpack.c.l.b16 %v1363
        %v1403 = vpack.c.b16 %v1388, %v1387
        %v1404 = vpack.c.b16 %v1390, %v1389
        %v1405 = vpack.c.b16 %v1392, %v1391
        %v1406 = vpack.c.b16 %v1394, %v1393
        %v1407 = vpack.c.b16 %v1396, %v1395
        %v1408 = vpack.c.b16 %v1398, %v1397
        %v1409 = vpack.c.b16 %v1400, %v1399
        %v1410 = vpack.c.b16 %v1402, %v1401
        %1419 = vmatprep.subr.bf16.mxu0 0
        %1420 = vmatpush1.bf16.msra.mxu0 %v1403
        %1421 = vmatprep.subr.bf16.mxu0 0
        %1422 = vmatpush1.bf16.msra.mxu0 %v1404
        %1423 = vmatprep.subr.bf16.mxu0 0
        %1424 = vmatpush1.bf16.msra.mxu0 %v1405
        %1425 = vmatprep.subr.bf16.mxu0 0
        %1426 = vmatpush1.bf16.msra.mxu0 %v1406
        %1427 = vmatprep.subr.bf16.mxu0 0
        %1428 = vmatpush1.bf16.msra.mxu0 %v1407
        %1429 = vmatprep.subr.bf16.mxu0 0
        %1430 = vmatpush1.bf16.msra.mxu0 %v1408
        %1431 = vmatprep.subr.bf16.mxu0 0
        %1432 = vmatpush1.bf16.msra.mxu0 %v1409
        %1433 = vmatprep.subr.bf16.mxu0 0
        %1434 = vmatpush1.bf16.msra.mxu0 %v1410
        %1435 = vmatprep.subr.bf16.mxu0 0
        %1436 = vmatpush1.bf16.msra.mxu0 0
        %1437 = vmatprep.subr.bf16.mxu0 0
        %1438 = vmatpush1.bf16.msra.mxu0 0
        %1439 = vmatprep.subr.bf16.mxu0 0
        %1440 = vmatpush1.bf16.msra.mxu0 0
        %1441 = vmatprep.subr.bf16.mxu0 0
        %1442 = vmatpush1.bf16.msra.mxu0 0
        %1443 = vmatprep.subr.bf16.mxu0 0
        %1444 = vmatpush1.bf16.msra.mxu0 0
        %1445 = vmatprep.subr.bf16.mxu0 0
        %1446 = vmatpush1.bf16.msra.mxu0 0
        %1447 = vmatprep.subr.bf16.mxu0 0
        %1448 = vmatpush1.bf16.msra.mxu0 0
        %1449 = vmatprep.subr.bf16.mxu0 0
        %1450 = vmatpush1.bf16.msra.mxu0 0
        %1451 = vmatprep.mubr.bf16.mxu0 0
        %1452 = vmatmul.mubr.bf16.gmra.mrb[0].mxu0 %v1347
        %v1453 = vpop.f32.mrb[0].mxu0
        %v1454 = vadd.f32 %v1369, %v1453
        %v1455 = vpop.f32.mrb[0].mxu0
        %v1456 = vpop.f32.mrb[0].mxu0
        %v1457 = vadd.f32 %v1369, %v1456
        %v1458 = vpop.f32.mrb[0].mxu0
        %1459 = vdwg.mxu0
        %v1460 = vmax.f32 %v1454, 0.0
        %v1461 = vmax.f32 %v1457, 0.0
        %v1462 = vld [vmem:[%s11] sm:$0x1]
        %v1464 = vlaneseq
        %v1465 = vshrl.u32 %v1464, 7
        %v1466 = vsub.s32 0, %v1465
        %v1467 = vrot.slane %v1462, %v1466
        %v1469 = vmul.f32 %v1460, %v1467
        %v1470 = vmul.f32 %v1461, %v1467
        %vm1471 = vcmask 523264
        %v1472 = vsel %vm1471, %v1469, 0.0
        %1473 = vadd.xlane.f32.xlu0 %v1472
        %v1474 = vpop.xlane.xlu0 %1473
        %v1475 = vsel %vm1471, %v1470, 0.0
        %1476 = vadd.xlane.f32.xlu0 %v1475
        %v1477 = vpop.xlane.xlu0 %1476
        %v1478 = vld [vmem:[#allocation2] sm:$0x1]
        %v1480 = vlaneseq
        %v1481 = vshrl.u32 %v1480, 7
        %v1482 = vsub.s32 0, %v1481
        %v1483 = vrot.slane %v1478, %v1482
        %v1485 = vadd.f32 %v1474, %v1483
        %v1486 = vadd.f32 %v1477, %v1483
        %vm1487 = vcmask 7168
        %1488 = vst.msk [vmem:[%s552] sm:$0xff] %vm1487, %v1485
        %1489 = vst.msk [vmem:[%s552 + $0x8] sm:$0xff] %vm1487, %v1486
        %s1490 = sand.u32 %s320, 1
        %s1491 = scalar_lea.sflag [#allocation5], %s1490
        %s1492 = sand.u32 %s320, 1
        %s1493 = smul.addr %s1492, 8
        %s1494 = scalar_lea.vmem [#allocation12], %s1493
        %s1495 = smul.u32 2, %s34
        %p1496 = scmp.lt.s32.totalorder %s1495, 3
        %s1497 = scalar_select %p1496, %s1495, 3
        %s1498 = smul.addr %s1497, 8
        %s1499 = scalar_lea.vmem %s14, %s1498
        // Predicated region
        $region93: #{tpu_custom_call.1} parent=71 // pred_check
          %p1500 = pneg %p330
        $region94: #{tpu_custom_call.1} parent=71 // pred_check_branch
          %1502 = sbr.rel (%p1500) target = $region96
        $region95: #{tpu_custom_call.1} parent=71 // pred_region
          %s1503 = smul.u32 2, %s34
          %s1505 = ssub.s32 128, 128
          %1506 = vsyncadd %s1491, %s1505
          %s1507 = smul.addr %s1503, 64
          %s1508 = scalar_lea.hbm %s13, %s1507
          %s1509 = sshll.u32 %s1494, 4
          %s1510 = int_to_ptr.vmem [resolvable:$true] %s1509
          %1515 = dma.vmem_to_hbm [thread:$0]  %s1510, 128, %s1508, %s1491, 64, 64, 4
        $region96: #{tpu_custom_call.1} parent=71 // pred_fallthru
          _
        // Predicated region
        $region97: #{tpu_custom_call.1} parent=71 // pred_check
          %p1516 = pneg %p356
        $region98: #{tpu_custom_call.1} parent=71 // pred_check_branch
          %1518 = sbr.rel (%p1516) target = $region100
        $region99: #{tpu_custom_call.1} parent=71 // pred_region
          %s1519 = smul.u32 2, %s34
        $region100: #{tpu_custom_call.1} parent=71 // pred_fallthru
          _
      $region72: #{tpu_custom_call.1} parent=5 // pred_fallthru
        _
      %p1520 = scmp.le.s32.totalorder 2, %s29
      // Predicated region
      $region101: #{tpu_custom_call.1} parent=5 // pred_check
        %p1521 = pneg %p1520
      $region102: #{tpu_custom_call.1} parent=5 // pred_check_branch
        %1523 = sbr.rel (%p1521) target = $region104
      $region103: #{tpu_custom_call.1} parent=5 // pred_region
        %s1524 = ssub.s32 %s29, 2
        // Predicated region
        $region105: #{tpu_custom_call.1} parent=103 // pred_check
          %p1525 = pneg %p336
        $region106: #{tpu_custom_call.1} parent=103 // pred_check_branch
          %1527 = sbr.rel (%p1525) target = $region108
        $region107: #{tpu_custom_call.1} parent=103 // pred_region
          %s1528 = sand.u32 %s321, 1
          %s1529 = scalar_lea.sflag [#allocation5], %s1528
          %s1530 = sand.u32 %s321, 1
          %s1531 = smul.addr %s1530, 8
          %s1532 = scalar_lea.vmem [#allocation12], %s1531
          %1533 = dma.done %s1529, 128
        $region108: #{tpu_custom_call.1} parent=103 // pred_fallthru
          _
        // Predicated region
        $region109: #{tpu_custom_call.1} parent=103 // pred_check
          %p1534 = pneg %p362
        $region110: #{tpu_custom_call.1} parent=103 // pred_check_branch
          %1536 = sbr.rel (%p1534) target = $region112
        $region111: #{tpu_custom_call.1} parent=103 // pred_region
          %s1537 = smul.u32 2, %s35
          %p1538 = scmp.lt.s32.totalorder %s1537, 3
          %s1539 = scalar_select %p1538, %s1537, 3
          %s1540 = smul.addr %s1539, 8
          %s1541 = scalar_lea.vmem %s14, %s1540
        $region112: #{tpu_custom_call.1} parent=103 // pred_fallthru
          _
      $region104: #{tpu_custom_call.1} parent=5 // pred_fallthru
        _
    $region6: #{tpu_custom_call.1} parent=1 // loop_footer
      %s33 = sadd.s32 1, %s29
    $region7: #{tpu_custom_call.1} parent=1 // loop_footer_branch
      %28 = sbr.rel target = $region3
    $region8: #{tpu_custom_call.1} parent=1 // loop_exit
      _
    %1542 = vsyncpa [#allocation4], 1
    %s1543 = scalar_lea.sflag [#allocation4], 1
    %1544 = vsyncpa %s1543, 1
    %1545 = vsyncpa [#allocation7], 1
    %1546 = vsyncpa [#allocation10], 1
    %1547 = vsyncpa [#allocation5], 1
    %s1548 = scalar_lea.sflag [#allocation5], 1
    %1549 = vsyncpa %s1548, 1

</llo_original>
